<compile_context>
chip_gen: v7x
topology: tpu7x:2x2x1
jax: 0.10.0
libtpu: 0.0.40
codegen_flags: <defaults>
</compile_context>

<pallas_src>
import functools

import jax
import jax.numpy as jnp
from jax.experimental import pallas as pl
from jax.experimental.pallas import tpu as pltpu


def _round_up(n, m):
    return (n + m - 1) // m * m


def lstm_kernel(x2d_ref, wih_ref, whh_ref, b_ref, wout_ref, bout_ref,
                h0_ref, c0_ref, out_ref, xg_sc, *, T, Bp, Hp):
    # ---- Phase 0: time-parallel input projection, one big MXU matmul --------
    # x2d: (T*Bp, I) @ W_ih^T: (I, 4*Hp) -> (T*Bp, 4*Hp); bias fused once here.
    xg_sc[...] = (
        jnp.dot(x2d_ref[...], wih_ref[...], preferred_element_type=jnp.float32)
        + b_ref[...]
    )

    # ---- Phase 1: sequential recurrence (only h @ W_hh^T on the critical path)
    def step(t, carry):
        h, c = carry                                   # (Bp, Hp) f32 each
        row0 = pl.multiple_of(t * Bp, Bp)              # sublane-aligned slice start
        gates = xg_sc[pl.ds(row0, Bp), :] + jnp.dot(
            h.astype(whh_ref.dtype), whh_ref[...],
            preferred_element_type=jnp.float32)        # (Bp, 4*Hp) f32

        # Lane-aligned 128-wide gate slices (Hp is a multiple of 128).
        i_g = jax.nn.sigmoid(gates[:, 0 * Hp:1 * Hp])
        f_g = jax.nn.sigmoid(gates[:, 1 * Hp:2 * Hp])
        g_g = jnp.tanh(gates[:, 2 * Hp:3 * Hp])
        o_g = jax.nn.sigmoid(gates[:, 3 * Hp:4 * Hp])

        c = f_g * c + i_g * g_g
        h = o_g * jnp.tanh(c)
        return (h, c)

    h0 = h0_ref[...].astype(jnp.float32)
    c0 = c0_ref[...].astype(jnp.float32)
    # Short, fixed trip count -> fully unroll (LLO scheduler visibility).
    h_n, _ = jax.lax.fori_loop(0, T, step, (h0, c0), unroll=True)

    # ---- Final Linear on h_n (tiny, done once, f32, lane-dense padded output)
    out_ref[...] = (
        jnp.dot(h_n, wout_ref[...], preferred_element_type=jnp.float32)
        + bout_ref[...]
    ).astype(out_ref.dtype)


def lstm_forward(x, h_0, c_0, params, *, use_bf16=True):
    """x: (T, B, I), h_0/c_0: (1, B, H)  ->  logits: (1, B, O) (float32)."""
    T, B, I = x.shape
    H = params["w_hh"].shape[1]          # w_hh: (4H, H)
    O = params["w_out"].shape[0]         # w_out: (O, H)

    Hp = _round_up(H, 128)               # lane-align each gate
    Bp = _round_up(B, 8)                 # sublane-align the batch
    Op = _round_up(O, 128)               # lane-dense output store
    mm_dtype = jnp.bfloat16 if use_bf16 else jnp.float32

    def pad_gate_weight(w, in_dim, in_dim_p):
        # w: (4H, in_dim) -> (in_dim_p, 4*Hp); each gate block zero-padded H -> Hp.
        w4 = w.reshape(4, H, in_dim)
        w4 = jnp.pad(w4, ((0, 0), (0, Hp - H), (0, in_dim_p - in_dim)))
        return jnp.transpose(w4, (2, 0, 1)).reshape(in_dim_p, 4 * Hp)

    wih_p = pad_gate_weight(params["w_ih"], I, I).astype(mm_dtype)       # (I, 4Hp)
    whh_p = pad_gate_weight(params["w_hh"], H, Hp).astype(mm_dtype)      # (Hp, 4Hp)
    bias = (params["b_ih"] + params["b_hh"]).reshape(4, H)
    bias_p = jnp.pad(bias, ((0, 0), (0, Hp - H))).reshape(1, 4 * Hp)     # (1, 4Hp) f32
    wout_p = jnp.pad(params["w_out"].T.astype(jnp.float32),
                     ((0, Hp - H), (0, Op - O)))                         # (Hp, Op)
    bout_p = jnp.pad(params["b_out"].astype(jnp.float32),
                     ((0, Op - O),)).reshape(1, Op)                      # (1, Op)

    # Zero-padded inputs / initial state. Padded hidden lanes stay exactly 0 through
    # the recurrence because the corresponding weight/bias columns are 0:
    #   gates_pad = 0 -> f=i=o=0.5, g=0, c_pad = 0.5*0 + 0.5*0 = 0, h_pad = 0.5*tanh(0)=0.
    x_p = jnp.pad(x, ((0, 0), (0, Bp - B), (0, 0))).reshape(T * Bp, I).astype(mm_dtype)
    h0_p = jnp.pad(h_0[0], ((0, Bp - B), (0, Hp - H))).astype(jnp.float32)
    c0_p = jnp.pad(c_0[0], ((0, Bp - B), (0, Hp - H))).astype(jnp.float32)

    out = pl.pallas_call(
        functools.partial(lstm_kernel, T=T, Bp=Bp, Hp=Hp),
        out_shape=jax.ShapeDtypeStruct((Bp, Op), jnp.float32),
        grid_spec=pltpu.PrefetchScalarGridSpec(
            num_scalar_prefetch=0,
            grid=(1,),  # whole (small) sequence resident in VMEM, one invocation
            in_specs=[
                pl.BlockSpec((T * Bp, I), lambda i: (0, 0)),     # x (flattened T,B)
                pl.BlockSpec((I, 4 * Hp), lambda i: (0, 0)),     # W_ih^T (padded)
                pl.BlockSpec((Hp, 4 * Hp), lambda i: (0, 0)),    # W_hh^T (padded)
                pl.BlockSpec((1, 4 * Hp), lambda i: (0, 0)),     # b_ih + b_hh
                pl.BlockSpec((Hp, Op), lambda i: (0, 0)),        # W_out^T (padded)
                pl.BlockSpec((1, Op), lambda i: (0, 0)),         # b_out (padded)
                pl.BlockSpec((Bp, Hp), lambda i: (0, 0)),        # h_0 (padded)
                pl.BlockSpec((Bp, Hp), lambda i: (0, 0)),        # c_0 (padded)
            ],
            out_specs=pl.BlockSpec((Bp, Op), lambda i: (0, 0)),
            scratch_shapes=[
                pltpu.VMEM((T * Bp, 4 * Hp), jnp.float32),       # precomputed x-gates
            ],
        ),
        compiler_params=pltpu.CompilerParams(
            dimension_semantics=("arbitrary",),
            vmem_limit_bytes=32 * 1024 * 1024,
        ),
    )(x_p, wih_p, whh_p, bias_p, wout_p, bout_p, h0_p, c0_p)

    return out[:B, :O].reshape(1, B, O)


def lstm_reference(x, h_0, c_0, params):
    """Pure-JAX reference replicating torch.nn.LSTM + Linear semantics (f32)."""
    H = params["w_hh"].shape[1]
    h = h_0[0].astype(jnp.float32)
    c = c_0[0].astype(jnp.float32)
    wih_t = params["w_ih"].T
    whh_t = params["w_hh"].T
    bias = params["b_ih"] + params["b_hh"]

    def step(carry, x_t):
        h, c = carry
        gates = x_t @ wih_t + h @ whh_t + bias
        i = jax.nn.sigmoid(gates[:, 0 * H:1 * H])
        f = jax.nn.sigmoid(gates[:, 1 * H:2 * H])
        g = jnp.tanh(gates[:, 2 * H:3 * H])
        o = jax.nn.sigmoid(gates[:, 3 * H:4 * H])
        c = f * c + i * g
        h = o * jnp.tanh(c)
        return (h, c), None

    (h, c), _ = jax.lax.scan(step, (h, c), x.astype(jnp.float32))
    logits = h @ params["w_out"].T + params["b_out"]
    return logits[None, :, :]


if __name__ == "__main__":
    seq_len, batch, input_size, hidden, output_size = 8, 2, 16, 32, 8

    key = jax.random.PRNGKey(0)
    ks = jax.random.split(key, 9)
    bound = 1.0 / jnp.sqrt(hidden)

    params = {
        "w_ih": jax.random.uniform(ks[0], (4 * hidden, input_size), jnp.float32, -bound, bound),
        "w_hh": jax.random.uniform(ks[1], (4 * hidden, hidden), jnp.float32, -bound, bound),
        "b_ih": jax.random.uniform(ks[2], (4 * hidden,), jnp.float32, -bound, bound),
        "b_hh": jax.random.uniform(ks[3], (4 * hidden,), jnp.float32, -bound, bound),
        "w_out": jax.random.uniform(ks[4], (output_size, hidden), jnp.float32, -bound, bound),
        "b_out": jax.random.uniform(ks[5], (output_size,), jnp.float32, -bound, bound),
    }

    x = jax.random.normal(ks[6], (seq_len, batch, input_size), jnp.float32)
    h_0 = jax.random.normal(ks[7], (1, batch, hidden), jnp.float32)
    c_0 = jax.random.normal(ks[8], (1, batch, hidden), jnp.float32)

    ref = lstm_reference(x, h_0, c_0, params)

    # f32 MXU path: exact-semantics check against the reference.
    logits_f32 = jax.block_until_ready(lstm_forward(x, h_0, c_0, params, use_bf16=False))
    assert logits_f32.shape == (1, batch, output_size)
    assert jnp.allclose(logits_f32, ref, atol=1e-5, rtol=1e-5), \
        f"f32 path max abs diff {jnp.max(jnp.abs(logits_f32 - ref))}"

    # bf16-MXU path (f32 accumulation + f32 gate math): relaxed tolerance.
    logits_bf16 = jax.block_until_ready(lstm_forward(x, h_0, c_0, params, use_bf16=True))
    assert logits_bf16.shape == (1, batch, output_size)
    assert jnp.allclose(logits_bf16, ref, atol=2e-2, rtol=2e-2), \
        f"bf16 path max abs diff {jnp.max(jnp.abs(logits_bf16 - ref))}"

    print("KERNEL_OK")
</pallas_src>

<mosaic_0001>
module attributes {stable_mosaic.version = 11 : i64} {
  func.func @lstm_kernel(%arg0: i32, %arg1: memref<64x16xf32, #tpu.memory_space<vmem>>, %arg2: memref<16x512xf32, #tpu.memory_space<vmem>>, %arg3: memref<128x512xf32, #tpu.memory_space<vmem>>, %arg4: memref<1x512xf32, #tpu.memory_space<vmem>>, %arg5: memref<128x128xf32, #tpu.memory_space<vmem>>, %arg6: memref<1x128xf32, #tpu.memory_space<vmem>>, %arg7: memref<8x128xf32, #tpu.memory_space<vmem>>, %arg8: memref<8x128xf32, #tpu.memory_space<vmem>>, %arg9: memref<8x128xf32, #tpu.memory_space<vmem>>, %arg10: memref<64x512xf32, #tpu.memory_space<vmem>>) attributes {dimension_semantics = [#tpu.dimension_semantics<arbitrary>], iteration_bounds = array<i64: 1>, scalar_prefetch = 0 : i64, scratch_operands = 1 : i64, tpu.core_type = #tpu.core_type<tc>, window_params = [{pipeline_mode = #tpu.pipeline_mode<synchronous>, transform_indices = @transform_0, window_bounds = array<i64: 64, 16>}, {pipeline_mode = #tpu.pipeline_mode<synchronous>, transform_indices = @transform_1, window_bounds = array<i64: 16, 512>}, {pipeline_mode = #tpu.pipeline_mode<synchronous>, transform_indices = @transform_2, window_bounds = array<i64: 128, 512>}, {pipeline_mode = #tpu.pipeline_mode<synchronous>, transform_indices = @transform_3, window_bounds = array<i64: 1, 512>}, {pipeline_mode = #tpu.pipeline_mode<synchronous>, transform_indices = @transform_4, window_bounds = array<i64: 128, 128>}, {pipeline_mode = #tpu.pipeline_mode<synchronous>, transform_indices = @transform_5, window_bounds = array<i64: 1, 128>}, {pipeline_mode = #tpu.pipeline_mode<synchronous>, transform_indices = @transform_6, window_bounds = array<i64: 8, 128>}, {pipeline_mode = #tpu.pipeline_mode<synchronous>, transform_indices = @transform_7, window_bounds = array<i64: 8, 128>}, {pipeline_mode = #tpu.pipeline_mode<synchronous>, transform_indices = @transform_8, window_bounds = array<i64: 8, 128>}]} {
    %c0 = arith.constant 0 : index
    %c0_0 = arith.constant 0 : index
    %0 = vector.load %arg1[%c0, %c0_0] : memref<64x16xf32, #tpu.memory_space<vmem>>, vector<64x16xf32>
    %c0_1 = arith.constant 0 : index
    %c0_2 = arith.constant 0 : index
    %1 = vector.load %arg2[%c0_1, %c0_2] : memref<16x512xf32, #tpu.memory_space<vmem>>, vector<16x512xf32>
    %cst = arith.constant dense<0.000000e+00> : vector<64x512xf32>
    %2 = tpu.matmul %0, %1, %cst {dimension_numbers = #tpu.dot_dimension_numbers<[1], [0], [0], [1], [0, 0, 1, 1], [], []>} : vector<64x16xf32>, vector<16x512xf32>, vector<64x512xf32> -> vector<64x512xf32>
    %c0_3 = arith.constant 0 : index
    %c0_4 = arith.constant 0 : index
    %3 = vector.load %arg4[%c0_3, %c0_4] : memref<1x512xf32, #tpu.memory_space<vmem>>, vector<1x512xf32>
    %4 = vector.broadcast %3 : vector<1x512xf32> to vector<64x512xf32>
    %5 = arith.addf %2, %4 : vector<64x512xf32>
    %c0_5 = arith.constant 0 : index
    %c0_6 = arith.constant 0 : index
    %6 = vector.load %arg10[%c0_5, %c0_6] : memref<64x512xf32, #tpu.memory_space<vmem>>, vector<64x512xf32>
    tpu.vector_store %arg10[%c0_5, %c0_6], %5 {strides = array<i32>} : memref<64x512xf32, #tpu.memory_space<vmem>>, vector<64x512xf32>,
    %c0_7 = arith.constant 0 : index
    %c0_8 = arith.constant 0 : index
    %7 = vector.load %arg7[%c0_7, %c0_8] : memref<8x128xf32, #tpu.memory_space<vmem>>, vector<8x128xf32>
    %c0_9 = arith.constant 0 : index
    %c0_10 = arith.constant 0 : index
    %8 = vector.load %arg8[%c0_9, %c0_10] : memref<8x128xf32, #tpu.memory_space<vmem>>, vector<8x128xf32>
    %c0_i32 = arith.constant 0 : i32
    %c8_i32 = arith.constant 8 : i32
    %9 = arith.muli %c0_i32, %c8_i32 : i32
    %10 = tpu.assume_multiple %9, 8 : i32
    %11 = arith.index_cast %10 : i32 to index
    %c0_11 = arith.constant 0 : index
    %12 = vector.load %arg10[%11, %c0_11] : memref<64x512xf32, #tpu.memory_space<vmem>>, vector<8x512xf32>
    %c0_12 = arith.constant 0 : index
    %c0_13 = arith.constant 0 : index
    %13 = vector.load %arg3[%c0_12, %c0_13] : memref<128x512xf32, #tpu.memory_space<vmem>>, vector<128x512xf32>
    %cst_14 = arith.constant dense<0.000000e+00> : vector<8x512xf32>
    %14 = tpu.matmul %7, %13, %cst_14 {dimension_numbers = #tpu.dot_dimension_numbers<[1], [0], [0], [1], [0, 0, 1, 1], [], []>} : vector<8x128xf32>, vector<128x512xf32>, vector<8x512xf32> -> vector<8x512xf32>
    %15 = arith.addf %12, %14 : vector<8x512xf32>
    %16 = vector.extract_strided_slice %15 {offsets = [0, 0], sizes = [8, 128], strides = [1, 1]} : vector<8x512xf32> to vector<8x128xf32>
    %17 = arith.negf %16 : vector<8x128xf32>
    %18 = math.exp %17 : vector<8x128xf32>
    %cst_15 = arith.constant 1.000000e+00 : f32
    %19 = vector.broadcast %cst_15 : f32 to vector<8x128xf32>
    %20 = arith.addf %19, %18 : vector<8x128xf32>
    %21 = arith.divf %19, %20 : vector<8x128xf32>
    %22 = vector.extract_strided_slice %15 {offsets = [0, 128], sizes = [8, 128], strides = [1, 1]} : vector<8x512xf32> to vector<8x128xf32>
    %23 = arith.negf %22 : vector<8x128xf32>
    %24 = math.exp %23 : vector<8x128xf32>
    %cst_16 = arith.constant 1.000000e+00 : f32
    %25 = vector.broadcast %cst_16 : f32 to vector<8x128xf32>
    %26 = arith.addf %25, %24 : vector<8x128xf32>
    %27 = arith.divf %25, %26 : vector<8x128xf32>
    %28 = vector.extract_strided_slice %15 {offsets = [0, 256], sizes = [8, 128], strides = [1, 1]} : vector<8x512xf32> to vector<8x128xf32>
    %29 = math.tanh %28 : vector<8x128xf32>
    %30 = vector.extract_strided_slice %15 {offsets = [0, 384], sizes = [8, 128], strides = [1, 1]} : vector<8x512xf32> to vector<8x128xf32>
    %31 = arith.negf %30 : vector<8x128xf32>
    %32 = math.exp %31 : vector<8x128xf32>
    %cst_17 = arith.constant 1.000000e+00 : f32
    %33 = vector.broadcast %cst_17 : f32 to vector<8x128xf32>
    %34 = arith.addf %33, %32 : vector<8x128xf32>
    %35 = arith.divf %33, %34 : vector<8x128xf32>
    %36 = arith.mulf %27, %8 : vector<8x128xf32>
    %37 = arith.mulf %21, %29 : vector<8x128xf32>
    %38 = arith.addf %36, %37 : vector<8x128xf32>
    %39 = math.tanh %38 : vector<8x128xf32>
    %40 = arith.mulf %35, %39 : vector<8x128xf32>
    %c1_i32 = arith.constant 1 : i32
    %c8_i32_18 = arith.constant 8 : i32
    %41 = arith.muli %c1_i32, %c8_i32_18 : i32
    %42 = tpu.assume_multiple %41, 8 : i32
    %43 = arith.index_cast %42 : i32 to index
    %c0_19 = arith.constant 0 : index
    %44 = vector.load %arg10[%43, %c0_19] : memref<64x512xf32, #tpu.memory_space<vmem>>, vector<8x512xf32>
    %c0_20 = arith.constant 0 : index
    %c0_21 = arith.constant 0 : index
    %45 = vector.load %arg3[%c0_20, %c0_21] : memref<128x512xf32, #tpu.memory_space<vmem>>, vector<128x512xf32>
    %cst_22 = arith.constant dense<0.000000e+00> : vector<8x512xf32>
    %46 = tpu.matmul %40, %45, %cst_22 {dimension_numbers = #tpu.dot_dimension_numbers<[1], [0], [0], [1], [0, 0, 1, 1], [], []>} : vector<8x128xf32>, vector<128x512xf32>, vector<8x512xf32> -> vector<8x512xf32>
    %47 = arith.addf %44, %46 : vector<8x512xf32>
    %48 = vector.extract_strided_slice %47 {offsets = [0, 0], sizes = [8, 128], strides = [1, 1]} : vector<8x512xf32> to vector<8x128xf32>
    %49 = arith.negf %48 : vector<8x128xf32>
    %50 = math.exp %49 : vector<8x128xf32>
    %cst_23 = arith.constant 1.000000e+00 : f32
    %51 = vector.broadcast %cst_23 : f32 to vector<8x128xf32>
    %52 = arith.addf %51, %50 : vector<8x128xf32>
    %53 = arith.divf %51, %52 : vector<8x128xf32>
    %54 = vector.extract_strided_slice %47 {offsets = [0, 128], sizes = [8, 128], strides = [1, 1]} : vector<8x512xf32> to vector<8x128xf32>
    %55 = arith.negf %54 : vector<8x128xf32>
    %56 = math.exp %55 : vector<8x128xf32>
    %cst_24 = arith.constant 1.000000e+00 : f32
    %57 = vector.broadcast %cst_24 : f32 to vector<8x128xf32>
    %58 = arith.addf %57, %56 : vector<8x128xf32>
    %59 = arith.divf %57, %58 : vector<8x128xf32>
    %60 = vector.extract_strided_slice %47 {offsets = [0, 256], sizes = [8, 128], strides = [1, 1]} : vector<8x512xf32> to vector<8x128xf32>
    %61 = math.tanh %60 : vector<8x128xf32>
    %62 = vector.extract_strided_slice %47 {offsets = [0, 384], sizes = [8, 128], strides = [1, 1]} : vector<8x512xf32> to vector<8x128xf32>
    %63 = arith.negf %62 : vector<8x128xf32>
    %64 = math.exp %63 : vector<8x128xf32>
    %cst_25 = arith.constant 1.000000e+00 : f32
    %65 = vector.broadcast %cst_25 : f32 to vector<8x128xf32>
    %66 = arith.addf %65, %64 : vector<8x128xf32>
    %67 = arith.divf %65, %66 : vector<8x128xf32>
    %68 = arith.mulf %59, %38 : vector<8x128xf32>
    %69 = arith.mulf %53, %61 : vector<8x128xf32>
    %70 = arith.addf %68, %69 : vector<8x128xf32>
    %71 = math.tanh %70 : vector<8x128xf32>
    %72 = arith.mulf %67, %71 : vector<8x128xf32>
    %c2_i32 = arith.constant 2 : i32
    %c8_i32_26 = arith.constant 8 : i32
    %73 = arith.muli %c2_i32, %c8_i32_26 : i32
    %74 = tpu.assume_multiple %73, 8 : i32
    %75 = arith.index_cast %74 : i32 to index
    %c0_27 = arith.constant 0 : index
    %76 = vector.load %arg10[%75, %c0_27] : memref<64x512xf32, #tpu.memory_space<vmem>>, vector<8x512xf32>
    %c0_28 = arith.constant 0 : index
    %c0_29 = arith.constant 0 : index
    %77 = vector.load %arg3[%c0_28, %c0_29] : memref<128x512xf32, #tpu.memory_space<vmem>>, vector<128x512xf32>
    %cst_30 = arith.constant dense<0.000000e+00> : vector<8x512xf32>
    %78 = tpu.matmul %72, %77, %cst_30 {dimension_numbers = #tpu.dot_dimension_numbers<[1], [0], [0], [1], [0, 0, 1, 1], [], []>} : vector<8x128xf32>, vector<128x512xf32>, vector<8x512xf32> -> vector<8x512xf32>
    %79 = arith.addf %76, %78 : vector<8x512xf32>
    %80 = vector.extract_strided_slice %79 {offsets = [0, 0], sizes = [8, 128], strides = [1, 1]} : vector<8x512xf32> to vector<8x128xf32>
    %81 = arith.negf %80 : vector<8x128xf32>
    %82 = math.exp %81 : vector<8x128xf32>
    %cst_31 = arith.constant 1.000000e+00 : f32
    %83 = vector.broadcast %cst_31 : f32 to vector<8x128xf32>
    %84 = arith.addf %83, %82 : vector<8x128xf32>
    %85 = arith.divf %83, %84 : vector<8x128xf32>
    %86 = vector.extract_strided_slice %79 {offsets = [0, 128], sizes = [8, 128], strides = [1, 1]} : vector<8x512xf32> to vector<8x128xf32>
    %87 = arith.negf %86 : vector<8x128xf32>
    %88 = math.exp %87 : vector<8x128xf32>
    %cst_32 = arith.constant 1.000000e+00 : f32
    %89 = vector.broadcast %cst_32 : f32 to vector<8x128xf32>
    %90 = arith.addf %89, %88 : vector<8x128xf32>
    %91 = arith.divf %89, %90 : vector<8x128xf32>
    %92 = vector.extract_strided_slice %79 {offsets = [0, 256], sizes = [8, 128], strides = [1, 1]} : vector<8x512xf32> to vector<8x128xf32>
    %93 = math.tanh %92 : vector<8x128xf32>
    %94 = vector.extract_strided_slice %79 {offsets = [0, 384], sizes = [8, 128], strides = [1, 1]} : vector<8x512xf32> to vector<8x128xf32>
    %95 = arith.negf %94 : vector<8x128xf32>
    %96 = math.exp %95 : vector<8x128xf32>
    %cst_33 = arith.constant 1.000000e+00 : f32
    %97 = vector.broadcast %cst_33 : f32 to vector<8x128xf32>
    %98 = arith.addf %97, %96 : vector<8x128xf32>
    %99 = arith.divf %97, %98 : vector<8x128xf32>
    %100 = arith.mulf %91, %70 : vector<8x128xf32>
    %101 = arith.mulf %85, %93 : vector<8x128xf32>
    %102 = arith.addf %100, %101 : vector<8x128xf32>
    %103 = math.tanh %102 : vector<8x128xf32>
    %104 = arith.mulf %99, %103 : vector<8x128xf32>
    %c3_i32 = arith.constant 3 : i32
    %c8_i32_34 = arith.constant 8 : i32
    %105 = arith.muli %c3_i32, %c8_i32_34 : i32
    %106 = tpu.assume_multiple %105, 8 : i32
    %107 = arith.index_cast %106 : i32 to index
    %c0_35 = arith.constant 0 : index
    %108 = vector.load %arg10[%107, %c0_35] : memref<64x512xf32, #tpu.memory_space<vmem>>, vector<8x512xf32>
    %c0_36 = arith.constant 0 : index
    %c0_37 = arith.constant 0 : index
    %109 = vector.load %arg3[%c0_36, %c0_37] : memref<128x512xf32, #tpu.memory_space<vmem>>, vector<128x512xf32>
    %cst_38 = arith.constant dense<0.000000e+00> : vector<8x512xf32>
    %110 = tpu.matmul %104, %109, %cst_38 {dimension_numbers = #tpu.dot_dimension_numbers<[1], [0], [0], [1], [0, 0, 1, 1], [], []>} : vector<8x128xf32>, vector<128x512xf32>, vector<8x512xf32> -> vector<8x512xf32>
    %111 = arith.addf %108, %110 : vector<8x512xf32>
    %112 = vector.extract_strided_slice %111 {offsets = [0, 0], sizes = [8, 128], strides = [1, 1]} : vector<8x512xf32> to vector<8x128xf32>
    %113 = arith.negf %112 : vector<8x128xf32>
    %114 = math.exp %113 : vector<8x128xf32>
    %cst_39 = arith.constant 1.000000e+00 : f32
    %115 = vector.broadcast %cst_39 : f32 to vector<8x128xf32>
    %116 = arith.addf %115, %114 : vector<8x128xf32>
    %117 = arith.divf %115, %116 : vector<8x128xf32>
    %118 = vector.extract_strided_slice %111 {offsets = [0, 128], sizes = [8, 128], strides = [1, 1]} : vector<8x512xf32> to vector<8x128xf32>
    %119 = arith.negf %118 : vector<8x128xf32>
    %120 = math.exp %119 : vector<8x128xf32>
    %cst_40 = arith.constant 1.000000e+00 : f32
    %121 = vector.broadcast %cst_40 : f32 to vector<8x128xf32>
    %122 = arith.addf %121, %120 : vector<8x128xf32>
    %123 = arith.divf %121, %122 : vector<8x128xf32>
    %124 = vector.extract_strided_slice %111 {offsets = [0, 256], sizes = [8, 128], strides = [1, 1]} : vector<8x512xf32> to vector<8x128xf32>
    %125 = math.tanh %124 : vector<8x128xf32>
    %126 = vector.extract_strided_slice %111 {offsets = [0, 384], sizes = [8, 128], strides = [1, 1]} : vector<8x512xf32> to vector<8x128xf32>
    %127 = arith.negf %126 : vector<8x128xf32>
    %128 = math.exp %127 : vector<8x128xf32>
    %cst_41 = arith.constant 1.000000e+00 : f32
    %129 = vector.broadcast %cst_41 : f32 to vector<8x128xf32>
    %130 = arith.addf %129, %128 : vector<8x128xf32>
    %131 = arith.divf %129, %130 : vector<8x128xf32>
    %132 = arith.mulf %123, %102 : vector<8x128xf32>
    %133 = arith.mulf %117, %125 : vector<8x128xf32>
    %134 = arith.addf %132, %133 : vector<8x128xf32>
    %135 = math.tanh %134 : vector<8x128xf32>
    %136 = arith.mulf %131, %135 : vector<8x128xf32>
    %c4_i32 = arith.constant 4 : i32
    %c8_i32_42 = arith.constant 8 : i32
    %137 = arith.muli %c4_i32, %c8_i32_42 : i32
    %138 = tpu.assume_multiple %137, 8 : i32
    %139 = arith.index_cast %138 : i32 to index
    %c0_43 = arith.constant 0 : index
    %140 = vector.load %arg10[%139, %c0_43] : memref<64x512xf32, #tpu.memory_space<vmem>>, vector<8x512xf32>
    %c0_44 = arith.constant 0 : index
    %c0_45 = arith.constant 0 : index
    %141 = vector.load %arg3[%c0_44, %c0_45] : memref<128x512xf32, #tpu.memory_space<vmem>>, vector<128x512xf32>
    %cst_46 = arith.constant dense<0.000000e+00> : vector<8x512xf32>
    %142 = tpu.matmul %136, %141, %cst_46 {dimension_numbers = #tpu.dot_dimension_numbers<[1], [0], [0], [1], [0, 0, 1, 1], [], []>} : vector<8x128xf32>, vector<128x512xf32>, vector<8x512xf32> -> vector<8x512xf32>
    %143 = arith.addf %140, %142 : vector<8x512xf32>
    %144 = vector.extract_strided_slice %143 {offsets = [0, 0], sizes = [8, 128], strides = [1, 1]} : vector<8x512xf32> to vector<8x128xf32>
    %145 = arith.negf %144 : vector<8x128xf32>
    %146 = math.exp %145 : vector<8x128xf32>
    %cst_47 = arith.constant 1.000000e+00 : f32
    %147 = vector.broadcast %cst_47 : f32 to vector<8x128xf32>
    %148 = arith.addf %147, %146 : vector<8x128xf32>
    %149 = arith.divf %147, %148 : vector<8x128xf32>
    %150 = vector.extract_strided_slice %143 {offsets = [0, 128], sizes = [8, 128], strides = [1, 1]} : vector<8x512xf32> to vector<8x128xf32>
    %151 = arith.negf %150 : vector<8x128xf32>
    %152 = math.exp %151 : vector<8x128xf32>
    %cst_48 = arith.constant 1.000000e+00 : f32
    %153 = vector.broadcast %cst_48 : f32 to vector<8x128xf32>
    %154 = arith.addf %153, %152 : vector<8x128xf32>
    %155 = arith.divf %153, %154 : vector<8x128xf32>
    %156 = vector.extract_strided_slice %143 {offsets = [0, 256], sizes = [8, 128], strides = [1, 1]} : vector<8x512xf32> to vector<8x128xf32>
    %157 = math.tanh %156 : vector<8x128xf32>
    %158 = vector.extract_strided_slice %143 {offsets = [0, 384], sizes = [8, 128], strides = [1, 1]} : vector<8x512xf32> to vector<8x128xf32>
    %159 = arith.negf %158 : vector<8x128xf32>
    %160 = math.exp %159 : vector<8x128xf32>
    %cst_49 = arith.constant 1.000000e+00 : f32
    %161 = vector.broadcast %cst_49 : f32 to vector<8x128xf32>
    %162 = arith.addf %161, %160 : vector<8x128xf32>
    %163 = arith.divf %161, %162 : vector<8x128xf32>
    %164 = arith.mulf %155, %134 : vector<8x128xf32>
    %165 = arith.mulf %149, %157 : vector<8x128xf32>
    %166 = arith.addf %164, %165 : vector<8x128xf32>
    %167 = math.tanh %166 : vector<8x128xf32>
    %168 = arith.mulf %163, %167 : vector<8x128xf32>
    %c5_i32 = arith.constant 5 : i32
    %c8_i32_50 = arith.constant 8 : i32
    %169 = arith.muli %c5_i32, %c8_i32_50 : i32
    %170 = tpu.assume_multiple %169, 8 : i32
    %171 = arith.index_cast %170 : i32 to index
    %c0_51 = arith.constant 0 : index
    %172 = vector.load %arg10[%171, %c0_51] : memref<64x512xf32, #tpu.memory_space<vmem>>, vector<8x512xf32>
    %c0_52 = arith.constant 0 : index
    %c0_53 = arith.constant 0 : index
    %173 = vector.load %arg3[%c0_52, %c0_53] : memref<128x512xf32, #tpu.memory_space<vmem>>, vector<128x512xf32>
    %cst_54 = arith.constant dense<0.000000e+00> : vector<8x512xf32>
    %174 = tpu.matmul %168, %173, %cst_54 {dimension_numbers = #tpu.dot_dimension_numbers<[1], [0], [0], [1], [0, 0, 1, 1], [], []>} : vector<8x128xf32>, vector<128x512xf32>, vector<8x512xf32> -> vector<8x512xf32>
    %175 = arith.addf %172, %174 : vector<8x512xf32>
    %176 = vector.extract_strided_slice %175 {offsets = [0, 0], sizes = [8, 128], strides = [1, 1]} : vector<8x512xf32> to vector<8x128xf32>
    %177 = arith.negf %176 : vector<8x128xf32>
    %178 = math.exp %177 : vector<8x128xf32>
    %cst_55 = arith.constant 1.000000e+00 : f32
    %179 = vector.broadcast %cst_55 : f32 to vector<8x128xf32>
    %180 = arith.addf %179, %178 : vector<8x128xf32>
    %181 = arith.divf %179, %180 : vector<8x128xf32>
    %182 = vector.extract_strided_slice %175 {offsets = [0, 128], sizes = [8, 128], strides = [1, 1]} : vector<8x512xf32> to vector<8x128xf32>
    %183 = arith.negf %182 : vector<8x128xf32>
    %184 = math.exp %183 : vector<8x128xf32>
    %cst_56 = arith.constant 1.000000e+00 : f32
    %185 = vector.broadcast %cst_56 : f32 to vector<8x128xf32>
    %186 = arith.addf %185, %184 : vector<8x128xf32>
    %187 = arith.divf %185, %186 : vector<8x128xf32>
    %188 = vector.extract_strided_slice %175 {offsets = [0, 256], sizes = [8, 128], strides = [1, 1]} : vector<8x512xf32> to vector<8x128xf32>
    %189 = math.tanh %188 : vector<8x128xf32>
    %190 = vector.extract_strided_slice %175 {offsets = [0, 384], sizes = [8, 128], strides = [1, 1]} : vector<8x512xf32> to vector<8x128xf32>
    %191 = arith.negf %190 : vector<8x128xf32>
    %192 = math.exp %191 : vector<8x128xf32>
    %cst_57 = arith.constant 1.000000e+00 : f32
    %193 = vector.broadcast %cst_57 : f32 to vector<8x128xf32>
    %194 = arith.addf %193, %192 : vector<8x128xf32>
    %195 = arith.divf %193, %194 : vector<8x128xf32>
    %196 = arith.mulf %187, %166 : vector<8x128xf32>
    %197 = arith.mulf %181, %189 : vector<8x128xf32>
    %198 = arith.addf %196, %197 : vector<8x128xf32>
    %199 = math.tanh %198 : vector<8x128xf32>
    %200 = arith.mulf %195, %199 : vector<8x128xf32>
    %c6_i32 = arith.constant 6 : i32
    %c8_i32_58 = arith.constant 8 : i32
    %201 = arith.muli %c6_i32, %c8_i32_58 : i32
    %202 = tpu.assume_multiple %201, 8 : i32
    %203 = arith.index_cast %202 : i32 to index
    %c0_59 = arith.constant 0 : index
    %204 = vector.load %arg10[%203, %c0_59] : memref<64x512xf32, #tpu.memory_space<vmem>>, vector<8x512xf32>
    %c0_60 = arith.constant 0 : index
    %c0_61 = arith.constant 0 : index
    %205 = vector.load %arg3[%c0_60, %c0_61] : memref<128x512xf32, #tpu.memory_space<vmem>>, vector<128x512xf32>
    %cst_62 = arith.constant dense<0.000000e+00> : vector<8x512xf32>
    %206 = tpu.matmul %200, %205, %cst_62 {dimension_numbers = #tpu.dot_dimension_numbers<[1], [0], [0], [1], [0, 0, 1, 1], [], []>} : vector<8x128xf32>, vector<128x512xf32>, vector<8x512xf32> -> vector<8x512xf32>
    %207 = arith.addf %204, %206 : vector<8x512xf32>
    %208 = vector.extract_strided_slice %207 {offsets = [0, 0], sizes = [8, 128], strides = [1, 1]} : vector<8x512xf32> to vector<8x128xf32>
    %209 = arith.negf %208 : vector<8x128xf32>
    %210 = math.exp %209 : vector<8x128xf32>
    %cst_63 = arith.constant 1.000000e+00 : f32
    %211 = vector.broadcast %cst_63 : f32 to vector<8x128xf32>
    %212 = arith.addf %211, %210 : vector<8x128xf32>
    %213 = arith.divf %211, %212 : vector<8x128xf32>
    %214 = vector.extract_strided_slice %207 {offsets = [0, 128], sizes = [8, 128], strides = [1, 1]} : vector<8x512xf32> to vector<8x128xf32>
    %215 = arith.negf %214 : vector<8x128xf32>
    %216 = math.exp %215 : vector<8x128xf32>
    %cst_64 = arith.constant 1.000000e+00 : f32
    %217 = vector.broadcast %cst_64 : f32 to vector<8x128xf32>
    %218 = arith.addf %217, %216 : vector<8x128xf32>
    %219 = arith.divf %217, %218 : vector<8x128xf32>
    %220 = vector.extract_strided_slice %207 {offsets = [0, 256], sizes = [8, 128], strides = [1, 1]} : vector<8x512xf32> to vector<8x128xf32>
    %221 = math.tanh %220 : vector<8x128xf32>
    %222 = vector.extract_strided_slice %207 {offsets = [0, 384], sizes = [8, 128], strides = [1, 1]} : vector<8x512xf32> to vector<8x128xf32>
    %223 = arith.negf %222 : vector<8x128xf32>
    %224 = math.exp %223 : vector<8x128xf32>
    %cst_65 = arith.constant 1.000000e+00 : f32
    %225 = vector.broadcast %cst_65 : f32 to vector<8x128xf32>
    %226 = arith.addf %225, %224 : vector<8x128xf32>
    %227 = arith.divf %225, %226 : vector<8x128xf32>
    %228 = arith.mulf %219, %198 : vector<8x128xf32>
    %229 = arith.mulf %213, %221 : vector<8x128xf32>
    %230 = arith.addf %228, %229 : vector<8x128xf32>
    %231 = math.tanh %230 : vector<8x128xf32>
    %232 = arith.mulf %227, %231 : vector<8x128xf32>
    %c7_i32 = arith.constant 7 : i32
    %c8_i32_66 = arith.constant 8 : i32
    %233 = arith.muli %c7_i32, %c8_i32_66 : i32
    %234 = tpu.assume_multiple %233, 8 : i32
    %235 = arith.index_cast %234 : i32 to index
    %c0_67 = arith.constant 0 : index
    %236 = vector.load %arg10[%235, %c0_67] : memref<64x512xf32, #tpu.memory_space<vmem>>, vector<8x512xf32>
    %c0_68 = arith.constant 0 : index
    %c0_69 = arith.constant 0 : index
    %237 = vector.load %arg3[%c0_68, %c0_69] : memref<128x512xf32, #tpu.memory_space<vmem>>, vector<128x512xf32>
    %cst_70 = arith.constant dense<0.000000e+00> : vector<8x512xf32>
    %238 = tpu.matmul %232, %237, %cst_70 {dimension_numbers = #tpu.dot_dimension_numbers<[1], [0], [0], [1], [0, 0, 1, 1], [], []>} : vector<8x128xf32>, vector<128x512xf32>, vector<8x512xf32> -> vector<8x512xf32>
    %239 = arith.addf %236, %238 : vector<8x512xf32>
    %240 = vector.extract_strided_slice %239 {offsets = [0, 0], sizes = [8, 128], strides = [1, 1]} : vector<8x512xf32> to vector<8x128xf32>
    %241 = arith.negf %240 : vector<8x128xf32>
    %242 = math.exp %241 : vector<8x128xf32>
    %cst_71 = arith.constant 1.000000e+00 : f32
    %243 = vector.broadcast %cst_71 : f32 to vector<8x128xf32>
    %244 = arith.addf %243, %242 : vector<8x128xf32>
    %245 = arith.divf %243, %244 : vector<8x128xf32>
    %246 = vector.extract_strided_slice %239 {offsets = [0, 128], sizes = [8, 128], strides = [1, 1]} : vector<8x512xf32> to vector<8x128xf32>
    %247 = arith.negf %246 : vector<8x128xf32>
    %248 = math.exp %247 : vector<8x128xf32>
    %cst_72 = arith.constant 1.000000e+00 : f32
    %249 = vector.broadcast %cst_72 : f32 to vector<8x128xf32>
    %250 = arith.addf %249, %248 : vector<8x128xf32>
    %251 = arith.divf %249, %250 : vector<8x128xf32>
    %252 = vector.extract_strided_slice %239 {offsets = [0, 256], sizes = [8, 128], strides = [1, 1]} : vector<8x512xf32> to vector<8x128xf32>
    %253 = math.tanh %252 : vector<8x128xf32>
    %254 = vector.extract_strided_slice %239 {offsets = [0, 384], sizes = [8, 128], strides = [1, 1]} : vector<8x512xf32> to vector<8x128xf32>
    %255 = arith.negf %254 : vector<8x128xf32>
    %256 = math.exp %255 : vector<8x128xf32>
    %cst_73 = arith.constant 1.000000e+00 : f32
    %257 = vector.broadcast %cst_73 : f32 to vector<8x128xf32>
    %258 = arith.addf %257, %256 : vector<8x128xf32>
    %259 = arith.divf %257, %258 : vector<8x128xf32>
    %260 = arith.mulf %251, %230 : vector<8x128xf32>
    %261 = arith.mulf %245, %253 : vector<8x128xf32>
    %262 = arith.addf %260, %261 : vector<8x128xf32>
    %263 = math.tanh %262 : vector<8x128xf32>
    %264 = arith.mulf %259, %263 : vector<8x128xf32>
    %c8_i32_74 = arith.constant 8 : i32
    %c0_75 = arith.constant 0 : index
    %c0_76 = arith.constant 0 : index
    %265 = vector.load %arg5[%c0_75, %c0_76] : memref<128x128xf32, #tpu.memory_space<vmem>>, vector<128x128xf32>
    %cst_77 = arith.constant dense<0.000000e+00> : vector<8x128xf32>
    %266 = tpu.matmul %264, %265, %cst_77 {dimension_numbers = #tpu.dot_dimension_numbers<[1], [0], [0], [1], [0, 0, 1, 1], [], []>} : vector<8x128xf32>, vector<128x128xf32>, vector<8x128xf32> -> vector<8x128xf32>
    %c0_78 = arith.constant 0 : index
    %c0_79 = arith.constant 0 : index
    %267 = vector.load %arg6[%c0_78, %c0_79] : memref<1x128xf32, #tpu.memory_space<vmem>>, vector<1x128xf32>
    %268 = vector.broadcast %267 : vector<1x128xf32> to vector<8x128xf32>
    %269 = arith.addf %266, %268 : vector<8x128xf32>
    %c0_80 = arith.constant 0 : index
    %c0_81 = arith.constant 0 : index
    %270 = vector.load %arg9[%c0_80, %c0_81] : memref<8x128xf32, #tpu.memory_space<vmem>>, vector<8x128xf32>
    tpu.vector_store %arg9[%c0_80, %c0_81], %269 {strides = array<i32>} : memref<8x128xf32, #tpu.memory_space<vmem>>, vector<8x128xf32>,
    return
  }
  func.func @transform_0(%arg0: i32) -> (i32, i32) {
    %c0_i32 = arith.constant 0 : i32
    %c0_i32_0 = arith.constant 0 : i32
    %c0_i32_1 = arith.constant 0 : i32
    return %c0_i32, %c0_i32_0 : i32, i32
  }
  func.func @transform_1(%arg0: i32) -> (i32, i32) {
    %c0_i32 = arith.constant 0 : i32
    %c0_i32_0 = arith.constant 0 : i32
    %c0_i32_1 = arith.constant 0 : i32
    return %c0_i32, %c0_i32_0 : i32, i32
  }
  func.func @transform_2(%arg0: i32) -> (i32, i32) {
    %c0_i32 = arith.constant 0 : i32
    %c0_i32_0 = arith.constant 0 : i32
    %c0_i32_1 = arith.constant 0 : i32
    return %c0_i32, %c0_i32_0 : i32, i32
  }
  func.func @transform_3(%arg0: i32) -> (i32, i32) {
    %c0_i32 = arith.constant 0 : i32
    %c0_i32_0 = arith.constant 0 : i32
    %c0_i32_1 = arith.constant 0 : i32
    return %c0_i32, %c0_i32_0 : i32, i32
  }
  func.func @transform_4(%arg0: i32) -> (i32, i32) {
    %c0_i32 = arith.constant 0 : i32
    %c0_i32_0 = arith.constant 0 : i32
    %c0_i32_1 = arith.constant 0 : i32
    return %c0_i32, %c0_i32_0 : i32, i32
  }
  func.func @transform_5(%arg0: i32) -> (i32, i32) {
    %c0_i32 = arith.constant 0 : i32
    %c0_i32_0 = arith.constant 0 : i32
    %c0_i32_1 = arith.constant 0 : i32
    return %c0_i32, %c0_i32_0 : i32, i32
  }
  func.func @transform_6(%arg0: i32) -> (i32, i32) {
    %c0_i32 = arith.constant 0 : i32
    %c0_i32_0 = arith.constant 0 : i32
    %c0_i32_1 = arith.constant 0 : i32
    return %c0_i32, %c0_i32_0 : i32, i32
  }
  func.func @transform_7(%arg0: i32) -> (i32, i32) {
    %c0_i32 = arith.constant 0 : i32
    %c0_i32_0 = arith.constant 0 : i32
    %c0_i32_1 = arith.constant 0 : i32
    return %c0_i32, %c0_i32_0 : i32, i32
  }
  func.func @transform_8(%arg0: i32) -> (i32, i32) {
    %c0_i32 = arith.constant 0 : i32
    %c0_i32_0 = arith.constant 0 : i32
    %c0_i32_1 = arith.constant 0 : i32
    return %c0_i32, %c0_i32_0 : i32, i32
  }
}

</mosaic_0001>

<llo_original>
// kernel: tpu_custom_call.1
$region0: #{tpu_custom_call.1}
  #allocation0 [shape = 'u32[]', space=smem, size = 0x4, offset = 0x4, fixed_abs, tag = 'smem constant byte address 0x4 - core index']
  #allocation1 [shape = 'u32[144,128]{1,0:T(1,128)}', space=vmem, size = 0x12000, scoped, tag = 'internal scratch']
  #allocation2 [shape = 'f32[64,512]{1,0:T(8,128)}', space=vmem, size = 0x20000, scoped, tag = 'scratch operand']
  %s0 = inlined_call_operand.vmem [shape: f32[64,16], index: 0, kind: input, shape index: {}]
  %s1 = inlined_call_operand.vmem [shape: f32[16,512], index: 1, kind: input, shape index: {}]
  %s2 = inlined_call_operand.hbm [shape: f32[128,512], index: 2, kind: input, shape index: {}]
  %s3 = inlined_call_operand.vmem [shape: f32[1,512], index: 3, kind: input, shape index: {}]
  %s4 = inlined_call_operand.hbm [shape: f32[128,128], index: 4, kind: input, shape index: {}]
  %s5 = inlined_call_operand.vmem [shape: f32[1,128], index: 5, kind: input, shape index: {}]
  %s6 = inlined_call_operand.vmem [shape: f32[8,128], index: 6, kind: input, shape index: {}]
  %s7 = inlined_call_operand.vmem [shape: f32[8,128], index: 7, kind: input, shape index: {}]
  %s8 = inlined_call_operand.hbm [shape: f32[8,128], index: 8, kind: output, shape index: {}]
  %s9 = sld [smem:[#allocation0]]
  $region50: #{tpu_custom_call.1} parent=0
    _
  %s11 = ssub.s32 1, %s9
  %s12 = scalar_select 0, %s11, %s9
  $region1: #{tpu_custom_call.1} parent=0
    #allocation3 [shape = 'u8[262144]{0}', space=vmem, size = 0x40000, scoped, tag = 'input window, operand 2, single buffered']
    #allocation4 [shape = 's32[1]{0}', space=sflag, size = 0x4, scoped, tag = 'scoped memory for tpu_custom_call.1']
    #allocation5 [shape = 's32[1]{0}', space=sflag, size = 0x4, scoped, tag = 'scoped memory for tpu_custom_call.1']
    #allocation6 [shape = 'u8[65536]{0}', space=vmem, size = 0x10000, scoped, tag = 'input window, operand 4, single buffered']
    #allocation7 [shape = 's32[1]{0}', space=sflag, size = 0x4, scoped, tag = 'scoped memory for tpu_custom_call.1']
    #allocation8 [shape = 'u8[4096]{0}', space=vmem, size = 0x1000, scoped, tag = 'output window, operand 0, single buffered']
    %13 = vsyncpa [#allocation4], 0
    %14 = vsyncpa [#allocation7], 0
    %15 = vsyncpa [#allocation5], 0
    // Predicated region
    $region2: #{tpu_custom_call.1} parent=1 // pred_check
      _
    $region3: #{tpu_custom_call.1} parent=1 // pred_check_branch
      %17 = sbr.rel (0) target = $region5
    $region4: #{tpu_custom_call.1} parent=1 // pred_region
      _
    $region5: #{tpu_custom_call.1} parent=1 // pred_fallthru
      _
    // Predicated region
    $region6: #{tpu_custom_call.1} parent=1 // pred_check
      _
    $region7: #{tpu_custom_call.1} parent=1 // pred_check_branch
      %19 = sbr.rel (0) target = $region9
    $region8: #{tpu_custom_call.1} parent=1 // pred_region
      _
    $region9: #{tpu_custom_call.1} parent=1 // pred_fallthru
      _
    // Predicated region
    $region10: #{tpu_custom_call.1} parent=1 // pred_check
      _
    $region11: #{tpu_custom_call.1} parent=1 // pred_check_branch
      %21 = sbr.rel (0) target = $region13
    $region12: #{tpu_custom_call.1} parent=1 // pred_region
      %s23 = ssub.s32 8192, 8192
      %24 = vsyncadd [#allocation4], %s23
      %s25 = sshll.u32 [#allocation3], 4
      %s26 = int_to_ptr.vmem [resolvable:$true] %s25
      %31 = dma.hbm_to_vmem [thread:$0]  %s2, 8192, %s26, [#allocation4], 512, 512, 32
    $region13: #{tpu_custom_call.1} parent=1 // pred_fallthru
      _
    // Predicated region
    $region14: #{tpu_custom_call.1} parent=1 // pred_check
      _
    $region15: #{tpu_custom_call.1} parent=1 // pred_check_branch
      %33 = sbr.rel (0) target = $region17
    $region16: #{tpu_custom_call.1} parent=1 // pred_region
      _
    $region17: #{tpu_custom_call.1} parent=1 // pred_fallthru
      _
    // Predicated region
    $region18: #{tpu_custom_call.1} parent=1 // pred_check
      _
    $region19: #{tpu_custom_call.1} parent=1 // pred_check_branch
      %35 = sbr.rel (0) target = $region21
    $region20: #{tpu_custom_call.1} parent=1 // pred_region
      %s37 = ssub.s32 2048, 2048
      %38 = vsyncadd [#allocation7], %s37
      %s39 = sshll.u32 [#allocation6], 4
      %s40 = int_to_ptr.vmem [resolvable:$true] %s39
      %45 = dma.hbm_to_vmem [thread:$0]  %s4, 2048, %s40, [#allocation7], 128, 128, 8
    $region21: #{tpu_custom_call.1} parent=1 // pred_fallthru
      _
    // Predicated region
    $region22: #{tpu_custom_call.1} parent=1 // pred_check
      _
    $region23: #{tpu_custom_call.1} parent=1 // pred_check_branch
      %47 = sbr.rel (0) target = $region25
    $region24: #{tpu_custom_call.1} parent=1 // pred_region
      _
    $region25: #{tpu_custom_call.1} parent=1 // pred_fallthru
      _
    // Predicated region
    $region26: #{tpu_custom_call.1} parent=1 // pred_check
      _
    $region27: #{tpu_custom_call.1} parent=1 // pred_check_branch
      %49 = sbr.rel (0) target = $region29
    $region28: #{tpu_custom_call.1} parent=1 // pred_region
      _
    $region29: #{tpu_custom_call.1} parent=1 // pred_fallthru
      _
    // Predicated region
    $region30: #{tpu_custom_call.1} parent=1 // pred_check
      _
    $region31: #{tpu_custom_call.1} parent=1 // pred_check_branch
      %51 = sbr.rel (0) target = $region33
    $region32: #{tpu_custom_call.1} parent=1 // pred_region
      _
    $region33: #{tpu_custom_call.1} parent=1 // pred_fallthru
      _
    // Predicated region
    $region34: #{tpu_custom_call.1} parent=1 // pred_check
      _
    $region35: #{tpu_custom_call.1} parent=1 // pred_check_branch
      %53 = sbr.rel (0) target = $region37
    $region36: #{tpu_custom_call.1} parent=1 // pred_region
      %54 = dma.done [#allocation4], 8192
    $region37: #{tpu_custom_call.1} parent=1 // pred_fallthru
      _
    // Predicated region
    $region38: #{tpu_custom_call.1} parent=1 // pred_check
      _
    $region39: #{tpu_custom_call.1} parent=1 // pred_check_branch
      %56 = sbr.rel (0) target = $region41
    $region40: #{tpu_custom_call.1} parent=1 // pred_region
      %57 = dma.done [#allocation7], 2048
    $region41: #{tpu_custom_call.1} parent=1 // pred_fallthru
      _
    %v58 = vld [vmem:[%s0] sm:$0xff]
    %v59 = vld [vmem:[%s0 + $0x8] sm:$0xff]
    %v60 = vld [vmem:[%s0 + $0x10] sm:$0xff]
    %v61 = vld [vmem:[%s0 + $0x18] sm:$0xff]
    %v62 = vld [vmem:[%s0 + $0x20] sm:$0xff]
    %v63 = vld [vmem:[%s0 + $0x28] sm:$0xff]
    %v64 = vld [vmem:[%s0 + $0x30] sm:$0xff]
    %v65 = vld [vmem:[%s0 + $0x38] sm:$0xff]
    %v66 = vld [vmem:[%s1] sm:$0xff]
    %v67 = vld [vmem:[%s1 + $0x8] sm:$0xff]
    %v68 = vld [vmem:[%s1 + $0x10] sm:$0xff]
    %v69 = vld [vmem:[%s1 + $0x18] sm:$0xff]
    %v70 = vld [vmem:[%s1 + $0x20] sm:$0xff]
    %v71 = vld [vmem:[%s1 + $0x28] sm:$0xff]
    %v72 = vld [vmem:[%s1 + $0x30] sm:$0xff]
    %v73 = vld [vmem:[%s1 + $0x38] sm:$0xff]
    %v74 = vld [vmem:[%s3] sm:$0xf]
    %v76 = vlaneseq
    %v77 = vshrl.u32 %v76, 7
    %v78 = vsub.s32 0, %v77
    %v79 = vrot.slane %v74, %v78
    %v80 = vlaneseq
    %v81 = vshrl.u32 %v80, 7
    %v82 = vsub.s32 1, %v81
    %v83 = vrot.slane %v74, %v82
    %v84 = vlaneseq
    %v85 = vshrl.u32 %v84, 7
    %v86 = vsub.s32 2, %v85
    %v87 = vrot.slane %v74, %v86
    %v88 = vlaneseq
    %v89 = vshrl.u32 %v88, 7
    %v90 = vsub.s32 3, %v89
    %v91 = vrot.slane %v74, %v90
    %vm96 = vcmask 130048
    %v98 = vsel %vm96, %v58, 0
    %v101 = vsel %vm96, %v59, 0
    %v104 = vsel %vm96, %v60, 0
    %v107 = vsel %vm96, %v61, 0
    %v110 = vsel %vm96, %v62, 0
    %v113 = vsel %vm96, %v63, 0
    %v116 = vsel %vm96, %v64, 0
    %v119 = vsel %vm96, %v65, 0
    %121 = vmatprep.subr.mxu0 %v67
    %122 = vmatpush1.msra.mxu0 %v66
    %123 = vmatprep.subr.mxu0 %v71
    %124 = vmatpush1.msra.mxu0 %v70
    %125 = vmatprep.subr.mxu0 0.0
    %126 = vmatpush1.msra.mxu0 0.0
    %127 = vmatprep.subr.mxu0 0.0
    %128 = vmatpush1.msra.mxu0 0.0
    %129 = vmatprep.subr.mxu0 0.0
    %130 = vmatpush1.msra.mxu0 0.0
    %131 = vmatprep.subr.mxu0 0.0
    %132 = vmatpush1.msra.mxu0 0.0
    %133 = vmatprep.subr.mxu0 0.0
    %134 = vmatpush1.msra.mxu0 0.0
    %135 = vmatprep.subr.mxu0 0.0
    %136 = vmatpush1.msra.mxu0 0.0
    %137 = vmatprep.subr.mxu0 0.0
    %138 = vmatpush1.msra.mxu0 0.0
    %139 = vmatprep.subr.mxu0 0.0
    %140 = vmatpush1.msra.mxu0 0.0
    %141 = vmatprep.subr.mxu0 0.0
    %142 = vmatpush1.msra.mxu0 0.0
    %143 = vmatprep.subr.mxu0 0.0
    %144 = vmatpush1.msra.mxu0 0.0
    %145 = vmatprep.subr.mxu0 0.0
    %146 = vmatpush1.msra.mxu0 0.0
    %147 = vmatprep.subr.mxu0 0.0
    %148 = vmatpush1.msra.mxu0 0.0
    %149 = vmatprep.subr.mxu0 0.0
    %150 = vmatpush1.msra.mxu0 0.0
    %151 = vmatprep.subr.mxu0 0.0
    %152 = vmatpush1.msra.mxu0 0.0
    %153 = vmatprep.subr.mxu0 0.0
    %154 = vmatpush1.msra.mxu0 0.0
    %155 = vmatprep.subr.mxu0 0.0
    %156 = vmatpush1.msra.mxu0 0.0
    %157 = vmatprep.subr.mxu0 0.0
    %158 = vmatpush1.msra.mxu0 0.0
    %159 = vmatprep.subr.mxu0 0.0
    %160 = vmatpush1.msra.mxu0 0.0
    %161 = vmatprep.subr.mxu0 0.0
    %162 = vmatpush1.msra.mxu0 0.0
    %163 = vmatprep.subr.mxu0 0.0
    %164 = vmatpush1.msra.mxu0 0.0
    %165 = vmatprep.subr.mxu0 0.0
    %166 = vmatpush1.msra.mxu0 0.0
    %167 = vmatprep.subr.mxu0 0.0
    %168 = vmatpush1.msra.mxu0 0.0
    %169 = vmatprep.subr.mxu0 0.0
    %170 = vmatpush1.msra.mxu0 0.0
    %171 = vmatprep.subr.mxu0 0.0
    %172 = vmatpush1.msra.mxu0 0.0
    %173 = vmatprep.subr.mxu0 0.0
    %174 = vmatpush1.msra.mxu0 0.0
    %175 = vmatprep.subr.mxu0 0.0
    %176 = vmatpush1.msra.mxu0 0.0
    %177 = vmatprep.subr.mxu0 0.0
    %178 = vmatpush1.msra.mxu0 0.0
    %179 = vmatprep.subr.mxu0 0.0
    %180 = vmatpush1.msra.mxu0 0.0
    %181 = vmatprep.subr.mxu0 0.0
    %182 = vmatpush1.msra.mxu0 0.0
    %183 = vmatprep.subr.mxu0 0.0
    %184 = vmatpush1.msra.mxu0 0.0
    %185 = vmatprep.mubr.f32.mxu0 0.0
    %186 = vmatmul.mubr.f32.gmra.mrb[0].mxu0 %v98
    %v187 = vpop.f32.mrb[0].mxu0
    %v188 = vadd.f32 %v79, %v187
    %v189 = vpop.f32.mrb[0].mxu0
    %v190 = vadd.f32 %v83, %v189
    %191 = vmatprep.mubr.f32.mxu0 0.0
    %192 = vmatmul.mubr.f32.gmra.mrb[0].mxu0 %v101
    %v193 = vpop.f32.mrb[0].mxu0
    %v194 = vadd.f32 %v79, %v193
    %v195 = vpop.f32.mrb[0].mxu0
    %v196 = vadd.f32 %v83, %v195
    %197 = vmatprep.mubr.f32.mxu0 0.0
    %198 = vmatmul.mubr.f32.gmra.mrb[0].mxu0 %v104
    %v199 = vpop.f32.mrb[0].mxu0
    %v200 = vadd.f32 %v79, %v199
    %v201 = vpop.f32.mrb[0].mxu0
    %v202 = vadd.f32 %v83, %v201
    %203 = vmatprep.mubr.f32.mxu0 0.0
    %204 = vmatmul.mubr.f32.gmra.mrb[0].mxu0 %v107
    %v205 = vpop.f32.mrb[0].mxu0
    %v206 = vadd.f32 %v79, %v205
    %v207 = vpop.f32.mrb[0].mxu0
    %v208 = vadd.f32 %v83, %v207
    %209 = vmatprep.mubr.f32.mxu0 0.0
    %210 = vmatmul.mubr.f32.gmra.mrb[0].mxu0 %v110
    %v211 = vpop.f32.mrb[0].mxu0
    %v212 = vadd.f32 %v79, %v211
    %v213 = vpop.f32.mrb[0].mxu0
    %v214 = vadd.f32 %v83, %v213
    %215 = vmatprep.mubr.f32.mxu0 0.0
    %216 = vmatmul.mubr.f32.gmra.mrb[0].mxu0 %v113
    %v217 = vpop.f32.mrb[0].mxu0
    %v218 = vadd.f32 %v79, %v217
    %v219 = vpop.f32.mrb[0].mxu0
    %v220 = vadd.f32 %v83, %v219
    %221 = vmatprep.mubr.f32.mxu0 0.0
    %222 = vmatmul.mubr.f32.gmra.mrb[0].mxu0 %v116
    %v223 = vpop.f32.mrb[0].mxu0
    %v224 = vadd.f32 %v79, %v223
    %v225 = vpop.f32.mrb[0].mxu0
    %v226 = vadd.f32 %v83, %v225
    %227 = vmatprep.mubr.f32.mxu0 0.0
    %228 = vmatmul.mubr.f32.gmra.mrb[0].mxu0 %v119
    %v229 = vpop.f32.mrb[0].mxu0
    %v230 = vadd.f32 %v79, %v229
    %v231 = vpop.f32.mrb[0].mxu0
    %v232 = vadd.f32 %v83, %v231
    %233 = vdwg.mxu0
    %234 = vmatprep.subr.mxu0 %v69
    %235 = vmatpush1.msra.mxu0 %v68
    %236 = vmatprep.subr.mxu0 %v73
    %237 = vmatpush1.msra.mxu0 %v72
    %238 = vmatprep.subr.mxu0 0.0
    %239 = vmatpush1.msra.mxu0 0.0
    %240 = vmatprep.subr.mxu0 0.0
    %241 = vmatpush1.msra.mxu0 0.0
    %242 = vmatprep.subr.mxu0 0.0
    %243 = vmatpush1.msra.mxu0 0.0
    %244 = vmatprep.subr.mxu0 0.0
    %245 = vmatpush1.msra.mxu0 0.0
    %246 = vmatprep.subr.mxu0 0.0
    %247 = vmatpush1.msra.mxu0 0.0
    %248 = vmatprep.subr.mxu0 0.0
    %249 = vmatpush1.msra.mxu0 0.0
    %250 = vmatprep.subr.mxu0 0.0
    %251 = vmatpush1.msra.mxu0 0.0
    %252 = vmatprep.subr.mxu0 0.0
    %253 = vmatpush1.msra.mxu0 0.0
    %254 = vmatprep.subr.mxu0 0.0
    %255 = vmatpush1.msra.mxu0 0.0
    %256 = vmatprep.subr.mxu0 0.0
    %257 = vmatpush1.msra.mxu0 0.0
    %258 = vmatprep.subr.mxu0 0.0
    %259 = vmatpush1.msra.mxu0 0.0
    %260 = vmatprep.subr.mxu0 0.0
    %261 = vmatpush1.msra.mxu0 0.0
    %262 = vmatprep.subr.mxu0 0.0
    %263 = vmatpush1.msra.mxu0 0.0
    %264 = vmatprep.subr.mxu0 0.0
    %265 = vmatpush1.msra.mxu0 0.0
    %266 = vmatprep.subr.mxu0 0.0
    %267 = vmatpush1.msra.mxu0 0.0
    %268 = vmatprep.subr.mxu0 0.0
    %269 = vmatpush1.msra.mxu0 0.0
    %270 = vmatprep.subr.mxu0 0.0
    %271 = vmatpush1.msra.mxu0 0.0
    %272 = vmatprep.subr.mxu0 0.0
    %273 = vmatpush1.msra.mxu0 0.0
    %274 = vmatprep.subr.mxu0 0.0
    %275 = vmatpush1.msra.mxu0 0.0
    %276 = vmatprep.subr.mxu0 0.0
    %277 = vmatpush1.msra.mxu0 0.0
    %278 = vmatprep.subr.mxu0 0.0
    %279 = vmatpush1.msra.mxu0 0.0
    %280 = vmatprep.subr.mxu0 0.0
    %281 = vmatpush1.msra.mxu0 0.0
    %282 = vmatprep.subr.mxu0 0.0
    %283 = vmatpush1.msra.mxu0 0.0
    %284 = vmatprep.subr.mxu0 0.0
    %285 = vmatpush1.msra.mxu0 0.0
    %286 = vmatprep.subr.mxu0 0.0
    %287 = vmatpush1.msra.mxu0 0.0
    %288 = vmatprep.subr.mxu0 0.0
    %289 = vmatpush1.msra.mxu0 0.0
    %290 = vmatprep.subr.mxu0 0.0
    %291 = vmatpush1.msra.mxu0 0.0
    %292 = vmatprep.subr.mxu0 0.0
    %293 = vmatpush1.msra.mxu0 0.0
    %294 = vmatprep.subr.mxu0 0.0
    %295 = vmatpush1.msra.mxu0 0.0
    %296 = vmatprep.subr.mxu0 0.0
    %297 = vmatpush1.msra.mxu0 0.0
    %298 = vmatprep.mubr.f32.mxu0 0.0
    %299 = vmatmul.mubr.f32.gmra.mrb[0].mxu0 %v98
    %v300 = vpop.f32.mrb[0].mxu0
    %v301 = vadd.f32 %v87, %v300
    %v302 = vpop.f32.mrb[0].mxu0
    %v303 = vadd.f32 %v91, %v302
    %304 = vmatprep.mubr.f32.mxu0 0.0
    %305 = vmatmul.mubr.f32.gmra.mrb[0].mxu0 %v101
    %v306 = vpop.f32.mrb[0].mxu0
    %v307 = vadd.f32 %v87, %v306
    %v308 = vpop.f32.mrb[0].mxu0
    %v309 = vadd.f32 %v91, %v308
    %310 = vmatprep.mubr.f32.mxu0 0.0
    %311 = vmatmul.mubr.f32.gmra.mrb[0].mxu0 %v104
    %v312 = vpop.f32.mrb[0].mxu0
    %v313 = vadd.f32 %v87, %v312
    %v314 = vpop.f32.mrb[0].mxu0
    %v315 = vadd.f32 %v91, %v314
    %316 = vmatprep.mubr.f32.mxu0 0.0
    %317 = vmatmul.mubr.f32.gmra.mrb[0].mxu0 %v107
    %v318 = vpop.f32.mrb[0].mxu0
    %v319 = vadd.f32 %v87, %v318
    %v320 = vpop.f32.mrb[0].mxu0
    %v321 = vadd.f32 %v91, %v320
    %322 = vmatprep.mubr.f32.mxu0 0.0
    %323 = vmatmul.mubr.f32.gmra.mrb[0].mxu0 %v110
    %v324 = vpop.f32.mrb[0].mxu0
    %v325 = vadd.f32 %v87, %v324
    %v326 = vpop.f32.mrb[0].mxu0
    %v327 = vadd.f32 %v91, %v326
    %328 = vmatprep.mubr.f32.mxu0 0.0
    %329 = vmatmul.mubr.f32.gmra.mrb[0].mxu0 %v113
    %v330 = vpop.f32.mrb[0].mxu0
    %v331 = vadd.f32 %v87, %v330
    %v332 = vpop.f32.mrb[0].mxu0
    %v333 = vadd.f32 %v91, %v332
    %334 = vmatprep.mubr.f32.mxu0 0.0
    %335 = vmatmul.mubr.f32.gmra.mrb[0].mxu0 %v116
    %v336 = vpop.f32.mrb[0].mxu0
    %v337 = vadd.f32 %v87, %v336
    %v338 = vpop.f32.mrb[0].mxu0
    %v339 = vadd.f32 %v91, %v338
    %340 = vmatprep.mubr.f32.mxu0 0.0
    %341 = vmatmul.mubr.f32.gmra.mrb[0].mxu0 %v119
    %v342 = vpop.f32.mrb[0].mxu0
    %v343 = vadd.f32 %v87, %v342
    %v344 = vpop.f32.mrb[0].mxu0
    %v345 = vadd.f32 %v91, %v344
    %346 = vdwg.mxu0
    %347 = vst [vmem:[#allocation2] sm:$0xff] %v188
    %348 = vst [vmem:[#allocation2 + $0x8] sm:$0xff] %v190
    %349 = vst [vmem:[#allocation2 + $0x10] sm:$0xff] %v301
    %350 = vst [vmem:[#allocation2 + $0x18] sm:$0xff] %v303
    %351 = vst [vmem:[#allocation2 + $0x20] sm:$0xff] %v194
    %352 = vst [vmem:[#allocation2 + $0x28] sm:$0xff] %v196
    %353 = vst [vmem:[#allocation2 + $0x30] sm:$0xff] %v307
    %354 = vst [vmem:[#allocation2 + $0x38] sm:$0xff] %v309
    %355 = vst [vmem:[#allocation2 + $0x40] sm:$0xff] %v200
    %356 = vst [vmem:[#allocation2 + $0x48] sm:$0xff] %v202
    %357 = vst [vmem:[#allocation2 + $0x50] sm:$0xff] %v313
    %358 = vst [vmem:[#allocation2 + $0x58] sm:$0xff] %v315
    %359 = vst [vmem:[#allocation2 + $0x60] sm:$0xff] %v206
    %360 = vst [vmem:[#allocation2 + $0x68] sm:$0xff] %v208
    %361 = vst [vmem:[#allocation2 + $0x70] sm:$0xff] %v319
    %362 = vst [vmem:[#allocation2 + $0x78] sm:$0xff] %v321
    %363 = vst [vmem:[#allocation2 + $0x80] sm:$0xff] %v212
    %364 = vst [vmem:[#allocation2 + $0x88] sm:$0xff] %v214
    %365 = vst [vmem:[#allocation2 + $0x90] sm:$0xff] %v325
    %366 = vst [vmem:[#allocation2 + $0x98] sm:$0xff] %v327
    %367 = vst [vmem:[#allocation2 + $0xa0] sm:$0xff] %v218
    %368 = vst [vmem:[#allocation2 + $0xa8] sm:$0xff] %v220
    %369 = vst [vmem:[#allocation2 + $0xb0] sm:$0xff] %v331
    %370 = vst [vmem:[#allocation2 + $0xb8] sm:$0xff] %v333
    %371 = vst [vmem:[#allocation2 + $0xc0] sm:$0xff] %v224
    %372 = vst [vmem:[#allocation2 + $0xc8] sm:$0xff] %v226
    %373 = vst [vmem:[#allocation2 + $0xd0] sm:$0xff] %v337
    %374 = vst [vmem:[#allocation2 + $0xd8] sm:$0xff] %v339
    %375 = vst [vmem:[#allocation2 + $0xe0] sm:$0xff] %v230
    %376 = vst [vmem:[#allocation2 + $0xe8] sm:$0xff] %v232
    %377 = vst [vmem:[#allocation2 + $0xf0] sm:$0xff] %v343
    %378 = vst [vmem:[#allocation2 + $0xf8] sm:$0xff] %v345
    %v379 = vld [vmem:[%s6] sm:$0xff]
    %v380 = vld [vmem:[%s7] sm:$0xff]
    %s381 = smul.u32 0, 4
    %s382 = smul.addr %s381, 8
    %s383 = scalar_lea.vmem [#allocation2], %s382
    %v384 = vld [vmem:[%s383] sm:$0xff]
    %v385 = vld [vmem:[%s383 + $0x8] sm:$0xff]
    %v386 = vld [vmem:[%s383 + $0x10] sm:$0xff]
    %v387 = vld [vmem:[%s383 + $0x18] sm:$0xff]
    %v388 = vld [vmem:[#allocation3] sm:$0xff]
    %v389 = vld [vmem:[#allocation3 + $0x8] sm:$0xff]
    %v390 = vld [vmem:[#allocation3 + $0x10] sm:$0xff]
    %v391 = vld [vmem:[#allocation3 + $0x18] sm:$0xff]
    %v392 = vld [vmem:[#allocation3 + $0x20] sm:$0xff]
    %v393 = vld [vmem:[#allocation3 + $0x28] sm:$0xff]
    %v394 = vld [vmem:[#allocation3 + $0x30] sm:$0xff]
    %v395 = vld [vmem:[#allocation3 + $0x38] sm:$0xff]
    %v396 = vld [vmem:[#allocation3 + $0x40] sm:$0xff]
    %v397 = vld [vmem:[#allocation3 + $0x48] sm:$0xff]
    %v398 = vld [vmem:[#allocation3 + $0x50] sm:$0xff]
    %v399 = vld [vmem:[#allocation3 + $0x58] sm:$0xff]
    %v400 = vld [vmem:[#allocation3 + $0x60] sm:$0xff]
    %v401 = vld [vmem:[#allocation3 + $0x68] sm:$0xff]
    %v402 = vld [vmem:[#allocation3 + $0x70] sm:$0xff]
    %v403 = vld [vmem:[#allocation3 + $0x78] sm:$0xff]
    %v404 = vld [vmem:[#allocation3 + $0x80] sm:$0xff]
    %v405 = vld [vmem:[#allocation3 + $0x88] sm:$0xff]
    %v406 = vld [vmem:[#allocation3 + $0x90] sm:$0xff]
    %v407 = vld [vmem:[#allocation3 + $0x98] sm:$0xff]
    %v408 = vld [vmem:[#allocation3 + $0xa0] sm:$0xff]
    %v409 = vld [vmem:[#allocation3 + $0xa8] sm:$0xff]
    %v410 = vld [vmem:[#allocation3 + $0xb0] sm:$0xff]
    %v411 = vld [vmem:[#allocation3 + $0xb8] sm:$0xff]
    %v412 = vld [vmem:[#allocation3 + $0xc0] sm:$0xff]
    %v413 = vld [vmem:[#allocation3 + $0xc8] sm:$0xff]
    %v414 = vld [vmem:[#allocation3 + $0xd0] sm:$0xff]
    %v415 = vld [vmem:[#allocation3 + $0xd8] sm:$0xff]
    %v416 = vld [vmem:[#allocation3 + $0xe0] sm:$0xff]
    %v417 = vld [vmem:[#allocation3 + $0xe8] sm:$0xff]
    %v418 = vld [vmem:[#allocation3 + $0xf0] sm:$0xff]
    %v419 = vld [vmem:[#allocation3 + $0xf8] sm:$0xff]
    %v420 = vld [vmem:[#allocation3 + $0x100] sm:$0xff]
    %v421 = vld [vmem:[#allocation3 + $0x108] sm:$0xff]
    %v422 = vld [vmem:[#allocation3 + $0x110] sm:$0xff]
    %v423 = vld [vmem:[#allocation3 + $0x118] sm:$0xff]
    %v424 = vld [vmem:[#allocation3 + $0x120] sm:$0xff]
    %v425 = vld [vmem:[#allocation3 + $0x128] sm:$0xff]
    %v426 = vld [vmem:[#allocation3 + $0x130] sm:$0xff]
    %v427 = vld [vmem:[#allocation3 + $0x138] sm:$0xff]
    %v428 = vld [vmem:[#allocation3 + $0x140] sm:$0xff]
    %v429 = vld [vmem:[#allocation3 + $0x148] sm:$0xff]
    %v430 = vld [vmem:[#allocation3 + $0x150] sm:$0xff]
    %v431 = vld [vmem:[#allocation3 + $0x158] sm:$0xff]
    %v432 = vld [vmem:[#allocation3 + $0x160] sm:$0xff]
    %v433 = vld [vmem:[#allocation3 + $0x168] sm:$0xff]
    %v434 = vld [vmem:[#allocation3 + $0x170] sm:$0xff]
    %v435 = vld [vmem:[#allocation3 + $0x178] sm:$0xff]
    %v436 = vld [vmem:[#allocation3 + $0x180] sm:$0xff]
    %v437 = vld [vmem:[#allocation3 + $0x188] sm:$0xff]
    %v438 = vld [vmem:[#allocation3 + $0x190] sm:$0xff]
    %v439 = vld [vmem:[#allocation3 + $0x198] sm:$0xff]
    %v440 = vld [vmem:[#allocation3 + $0x1a0] sm:$0xff]
    %v441 = vld [vmem:[#allocation3 + $0x1a8] sm:$0xff]
    %v442 = vld [vmem:[#allocation3 + $0x1b0] sm:$0xff]
    %v443 = vld [vmem:[#allocation3 + $0x1b8] sm:$0xff]
    %v444 = vld [vmem:[#allocation3 + $0x1c0] sm:$0xff]
    %v445 = vld [vmem:[#allocation3 + $0x1c8] sm:$0xff]
    %v446 = vld [vmem:[#allocation3 + $0x1d0] sm:$0xff]
    %v447 = vld [vmem:[#allocation3 + $0x1d8] sm:$0xff]
    %v448 = vld [vmem:[#allocation3 + $0x1e0] sm:$0xff]
    %v449 = vld [vmem:[#allocation3 + $0x1e8] sm:$0xff]
    %v450 = vld [vmem:[#allocation3 + $0x1f0] sm:$0xff]
    %v451 = vld [vmem:[#allocation3 + $0x1f8] sm:$0xff]
    %452 = vmatprep.subr.mxu0 %v389
    %453 = vmatpush1.msra.mxu0 %v388
    %454 = vmatprep.subr.mxu0 %v393
    %455 = vmatpush1.msra.mxu0 %v392
    %456 = vmatprep.subr.mxu0 %v397
    %457 = vmatpush1.msra.mxu0 %v396
    %458 = vmatprep.subr.mxu0 %v401
    %459 = vmatpush1.msra.mxu0 %v400
    %460 = vmatprep.subr.mxu0 %v405
    %461 = vmatpush1.msra.mxu0 %v404
    %462 = vmatprep.subr.mxu0 %v409
    %463 = vmatpush1.msra.mxu0 %v408
    %464 = vmatprep.subr.mxu0 %v413
    %465 = vmatpush1.msra.mxu0 %v412
    %466 = vmatprep.subr.mxu0 %v417
    %467 = vmatpush1.msra.mxu0 %v416
    %468 = vmatprep.subr.mxu0 %v421
    %469 = vmatpush1.msra.mxu0 %v420
    %470 = vmatprep.subr.mxu0 %v425
    %471 = vmatpush1.msra.mxu0 %v424
    %472 = vmatprep.subr.mxu0 %v429
    %473 = vmatpush1.msra.mxu0 %v428
    %474 = vmatprep.subr.mxu0 %v433
    %475 = vmatpush1.msra.mxu0 %v432
    %476 = vmatprep.subr.mxu0 %v437
    %477 = vmatpush1.msra.mxu0 %v436
    %478 = vmatprep.subr.mxu0 %v441
    %479 = vmatpush1.msra.mxu0 %v440
    %480 = vmatprep.subr.mxu0 %v445
    %481 = vmatpush1.msra.mxu0 %v444
    %482 = vmatprep.subr.mxu0 %v449
    %483 = vmatpush1.msra.mxu0 %v448
    %484 = vmatprep.subr.mxu0 0.0
    %485 = vmatpush1.msra.mxu0 0.0
    %486 = vmatprep.subr.mxu0 0.0
    %487 = vmatpush1.msra.mxu0 0.0
    %488 = vmatprep.subr.mxu0 0.0
    %489 = vmatpush1.msra.mxu0 0.0
    %490 = vmatprep.subr.mxu0 0.0
    %491 = vmatpush1.msra.mxu0 0.0
    %492 = vmatprep.subr.mxu0 0.0
    %493 = vmatpush1.msra.mxu0 0.0
    %494 = vmatprep.subr.mxu0 0.0
    %495 = vmatpush1.msra.mxu0 0.0
    %496 = vmatprep.subr.mxu0 0.0
    %497 = vmatpush1.msra.mxu0 0.0
    %498 = vmatprep.subr.mxu0 0.0
    %499 = vmatpush1.msra.mxu0 0.0
    %500 = vmatprep.subr.mxu0 0.0
    %501 = vmatpush1.msra.mxu0 0.0
    %502 = vmatprep.subr.mxu0 0.0
    %503 = vmatpush1.msra.mxu0 0.0
    %504 = vmatprep.subr.mxu0 0.0
    %505 = vmatpush1.msra.mxu0 0.0
    %506 = vmatprep.subr.mxu0 0.0
    %507 = vmatpush1.msra.mxu0 0.0
    %508 = vmatprep.subr.mxu0 0.0
    %509 = vmatpush1.msra.mxu0 0.0
    %510 = vmatprep.subr.mxu0 0.0
    %511 = vmatpush1.msra.mxu0 0.0
    %512 = vmatprep.subr.mxu0 0.0
    %513 = vmatpush1.msra.mxu0 0.0
    %514 = vmatprep.subr.mxu0 0.0
    %515 = vmatpush1.msra.mxu0 0.0
    %516 = vmatprep.mubr.f32.mxu0 0.0
    %517 = vmatmul.mubr.f32.gmra.mrb[0].mxu0 %v379
    %v518 = vpop.f32.mrb[0].mxu0
    %v519 = vadd.f32 0.0, %v518
    %v520 = vpop.f32.mrb[0].mxu0
    %v521 = vadd.f32 0.0, %v520
    %522 = vdwg.mxu0
    %523 = vmatprep.subr.mxu0 %v391
    %524 = vmatpush1.msra.mxu0 %v390
    %525 = vmatprep.subr.mxu0 %v395
    %526 = vmatpush1.msra.mxu0 %v394
    %527 = vmatprep.subr.mxu0 %v399
    %528 = vmatpush1.msra.mxu0 %v398
    %529 = vmatprep.subr.mxu0 %v403
    %530 = vmatpush1.msra.mxu0 %v402
    %531 = vmatprep.subr.mxu0 %v407
    %532 = vmatpush1.msra.mxu0 %v406
    %533 = vmatprep.subr.mxu0 %v411
    %534 = vmatpush1.msra.mxu0 %v410
    %535 = vmatprep.subr.mxu0 %v415
    %536 = vmatpush1.msra.mxu0 %v414
    %537 = vmatprep.subr.mxu0 %v419
    %538 = vmatpush1.msra.mxu0 %v418
    %539 = vmatprep.subr.mxu0 %v423
    %540 = vmatpush1.msra.mxu0 %v422
    %541 = vmatprep.subr.mxu0 %v427
    %542 = vmatpush1.msra.mxu0 %v426
    %543 = vmatprep.subr.mxu0 %v431
    %544 = vmatpush1.msra.mxu0 %v430
    %545 = vmatprep.subr.mxu0 %v435
    %546 = vmatpush1.msra.mxu0 %v434
    %547 = vmatprep.subr.mxu0 %v439
    %548 = vmatpush1.msra.mxu0 %v438
    %549 = vmatprep.subr.mxu0 %v443
    %550 = vmatpush1.msra.mxu0 %v442
    %551 = vmatprep.subr.mxu0 %v447
    %552 = vmatpush1.msra.mxu0 %v446
    %553 = vmatprep.subr.mxu0 %v451
    %554 = vmatpush1.msra.mxu0 %v450
    %555 = vmatprep.subr.mxu0 0.0
    %556 = vmatpush1.msra.mxu0 0.0
    %557 = vmatprep.subr.mxu0 0.0
    %558 = vmatpush1.msra.mxu0 0.0
    %559 = vmatprep.subr.mxu0 0.0
    %560 = vmatpush1.msra.mxu0 0.0
    %561 = vmatprep.subr.mxu0 0.0
    %562 = vmatpush1.msra.mxu0 0.0
    %563 = vmatprep.subr.mxu0 0.0
    %564 = vmatpush1.msra.mxu0 0.0
    %565 = vmatprep.subr.mxu0 0.0
    %566 = vmatpush1.msra.mxu0 0.0
    %567 = vmatprep.subr.mxu0 0.0
    %568 = vmatpush1.msra.mxu0 0.0
    %569 = vmatprep.subr.mxu0 0.0
    %570 = vmatpush1.msra.mxu0 0.0
    %571 = vmatprep.subr.mxu0 0.0
    %572 = vmatpush1.msra.mxu0 0.0
    %573 = vmatprep.subr.mxu0 0.0
    %574 = vmatpush1.msra.mxu0 0.0
    %575 = vmatprep.subr.mxu0 0.0
    %576 = vmatpush1.msra.mxu0 0.0
    %577 = vmatprep.subr.mxu0 0.0
    %578 = vmatpush1.msra.mxu0 0.0
    %579 = vmatprep.subr.mxu0 0.0
    %580 = vmatpush1.msra.mxu0 0.0
    %581 = vmatprep.subr.mxu0 0.0
    %582 = vmatpush1.msra.mxu0 0.0
    %583 = vmatprep.subr.mxu0 0.0
    %584 = vmatpush1.msra.mxu0 0.0
    %585 = vmatprep.subr.mxu0 0.0
    %586 = vmatpush1.msra.mxu0 0.0
    %587 = vmatprep.mubr.f32.mxu0 0.0
    %588 = vmatmul.mubr.f32.gmra.mrb[0].mxu0 %v379
    %v589 = vpop.f32.mrb[0].mxu0
    %v590 = vadd.f32 0.0, %v589
    %v591 = vpop.f32.mrb[0].mxu0
    %v592 = vadd.f32 0.0, %v591
    %593 = vdwg.mxu0
    %v594 = vadd.f32 %v384, %v519
    %v595 = vadd.f32 %v385, %v521
    %v596 = vadd.f32 %v386, %v590
    %v597 = vadd.f32 %v387, %v592
    %v598 = vxor.u32 %v594, 2147483648
    %v599 = vmul.f32 %v598, 1.442695
    %v600 = vpow.pop %v599
    %v601 = vadd.f32 %v600, 1.0
    %v602 = vrcp.pop %v601
    %v603 = vmul.f32 1.0, %v602
    %v604 = vxor.u32 %v595, 2147483648
    %v605 = vmul.f32 %v604, 1.442695
    %v606 = vpow.pop %v605
    %v607 = vadd.f32 %v606, 1.0
    %v608 = vrcp.pop %v607
    %v609 = vmul.f32 1.0, %v608
    %v610 = vtanh.pop %v596
    %v611 = vxor.u32 %v597, 2147483648
    %v612 = vmul.f32 %v611, 1.442695
    %v613 = vpow.pop %v612
    %v614 = vadd.f32 %v613, 1.0
    %v615 = vrcp.pop %v614
    %v616 = vmul.f32 1.0, %v615
    %v617 = vmul.f32 %v609, %v380
    %v618 = vmul.f32 %v603, %v610
    %v619 = vadd.f32 %v617, %v618
    %v620 = vtanh.pop %v619
    %v621 = vmul.f32 %v616, %v620
    %s622 = smul.u32 1, 4
    %s623 = smul.addr %s622, 8
    %s624 = scalar_lea.vmem [#allocation2], %s623
    %v625 = vld [vmem:[%s624] sm:$0xff]
    %v626 = vld [vmem:[%s624 + $0x8] sm:$0xff]
    %v627 = vld [vmem:[%s624 + $0x10] sm:$0xff]
    %v628 = vld [vmem:[%s624 + $0x18] sm:$0xff]
    %629 = vmatprep.subr.mxu0 %v389
    %630 = vmatpush1.msra.mxu0 %v388
    %631 = vmatprep.subr.mxu0 %v393
    %632 = vmatpush1.msra.mxu0 %v392
    %633 = vmatprep.subr.mxu0 %v397
    %634 = vmatpush1.msra.mxu0 %v396
    %635 = vmatprep.subr.mxu0 %v401
    %636 = vmatpush1.msra.mxu0 %v400
    %637 = vmatprep.subr.mxu0 %v405
    %638 = vmatpush1.msra.mxu0 %v404
    %639 = vmatprep.subr.mxu0 %v409
    %640 = vmatpush1.msra.mxu0 %v408
    %641 = vmatprep.subr.mxu0 %v413
    %642 = vmatpush1.msra.mxu0 %v412
    %643 = vmatprep.subr.mxu0 %v417
    %644 = vmatpush1.msra.mxu0 %v416
    %645 = vmatprep.subr.mxu0 %v421
    %646 = vmatpush1.msra.mxu0 %v420
    %647 = vmatprep.subr.mxu0 %v425
    %648 = vmatpush1.msra.mxu0 %v424
    %649 = vmatprep.subr.mxu0 %v429
    %650 = vmatpush1.msra.mxu0 %v428
    %651 = vmatprep.subr.mxu0 %v433
    %652 = vmatpush1.msra.mxu0 %v432
    %653 = vmatprep.subr.mxu0 %v437
    %654 = vmatpush1.msra.mxu0 %v436
    %655 = vmatprep.subr.mxu0 %v441
    %656 = vmatpush1.msra.mxu0 %v440
    %657 = vmatprep.subr.mxu0 %v445
    %658 = vmatpush1.msra.mxu0 %v444
    %659 = vmatprep.subr.mxu0 %v449
    %660 = vmatpush1.msra.mxu0 %v448
    %661 = vmatprep.subr.mxu0 0.0
    %662 = vmatpush1.msra.mxu0 0.0
    %663 = vmatprep.subr.mxu0 0.0
    %664 = vmatpush1.msra.mxu0 0.0
    %665 = vmatprep.subr.mxu0 0.0
    %666 = vmatpush1.msra.mxu0 0.0
    %667 = vmatprep.subr.mxu0 0.0
    %668 = vmatpush1.msra.mxu0 0.0
    %669 = vmatprep.subr.mxu0 0.0
    %670 = vmatpush1.msra.mxu0 0.0
    %671 = vmatprep.subr.mxu0 0.0
    %672 = vmatpush1.msra.mxu0 0.0
    %673 = vmatprep.subr.mxu0 0.0
    %674 = vmatpush1.msra.mxu0 0.0
    %675 = vmatprep.subr.mxu0 0.0
    %676 = vmatpush1.msra.mxu0 0.0
    %677 = vmatprep.subr.mxu0 0.0
    %678 = vmatpush1.msra.mxu0 0.0
    %679 = vmatprep.subr.mxu0 0.0
    %680 = vmatpush1.msra.mxu0 0.0
    %681 = vmatprep.subr.mxu0 0.0
    %682 = vmatpush1.msra.mxu0 0.0
    %683 = vmatprep.subr.mxu0 0.0
    %684 = vmatpush1.msra.mxu0 0.0
    %685 = vmatprep.subr.mxu0 0.0
    %686 = vmatpush1.msra.mxu0 0.0
    %687 = vmatprep.subr.mxu0 0.0
    %688 = vmatpush1.msra.mxu0 0.0
    %689 = vmatprep.subr.mxu0 0.0
    %690 = vmatpush1.msra.mxu0 0.0
    %691 = vmatprep.subr.mxu0 0.0
    %692 = vmatpush1.msra.mxu0 0.0
    %693 = vmatprep.mubr.f32.mxu0 0.0
    %694 = vmatmul.mubr.f32.gmra.mrb[0].mxu0 %v621
    %v695 = vpop.f32.mrb[0].mxu0
    %v696 = vadd.f32 0.0, %v695
    %v697 = vpop.f32.mrb[0].mxu0
    %v698 = vadd.f32 0.0, %v697
    %699 = vdwg.mxu0
    %700 = vmatprep.subr.mxu0 %v391
    %701 = vmatpush1.msra.mxu0 %v390
    %702 = vmatprep.subr.mxu0 %v395
    %703 = vmatpush1.msra.mxu0 %v394
    %704 = vmatprep.subr.mxu0 %v399
    %705 = vmatpush1.msra.mxu0 %v398
    %706 = vmatprep.subr.mxu0 %v403
    %707 = vmatpush1.msra.mxu0 %v402
    %708 = vmatprep.subr.mxu0 %v407
    %709 = vmatpush1.msra.mxu0 %v406
    %710 = vmatprep.subr.mxu0 %v411
    %711 = vmatpush1.msra.mxu0 %v410
    %712 = vmatprep.subr.mxu0 %v415
    %713 = vmatpush1.msra.mxu0 %v414
    %714 = vmatprep.subr.mxu0 %v419
    %715 = vmatpush1.msra.mxu0 %v418
    %716 = vmatprep.subr.mxu0 %v423
    %717 = vmatpush1.msra.mxu0 %v422
    %718 = vmatprep.subr.mxu0 %v427
    %719 = vmatpush1.msra.mxu0 %v426
    %720 = vmatprep.subr.mxu0 %v431
    %721 = vmatpush1.msra.mxu0 %v430
    %722 = vmatprep.subr.mxu0 %v435
    %723 = vmatpush1.msra.mxu0 %v434
    %724 = vmatprep.subr.mxu0 %v439
    %725 = vmatpush1.msra.mxu0 %v438
    %726 = vmatprep.subr.mxu0 %v443
    %727 = vmatpush1.msra.mxu0 %v442
    %728 = vmatprep.subr.mxu0 %v447
    %729 = vmatpush1.msra.mxu0 %v446
    %730 = vmatprep.subr.mxu0 %v451
    %731 = vmatpush1.msra.mxu0 %v450
    %732 = vmatprep.subr.mxu0 0.0
    %733 = vmatpush1.msra.mxu0 0.0
    %734 = vmatprep.subr.mxu0 0.0
    %735 = vmatpush1.msra.mxu0 0.0
    %736 = vmatprep.subr.mxu0 0.0
    %737 = vmatpush1.msra.mxu0 0.0
    %738 = vmatprep.subr.mxu0 0.0
    %739 = vmatpush1.msra.mxu0 0.0
    %740 = vmatprep.subr.mxu0 0.0
    %741 = vmatpush1.msra.mxu0 0.0
    %742 = vmatprep.subr.mxu0 0.0
    %743 = vmatpush1.msra.mxu0 0.0
    %744 = vmatprep.subr.mxu0 0.0
    %745 = vmatpush1.msra.mxu0 0.0
    %746 = vmatprep.subr.mxu0 0.0
    %747 = vmatpush1.msra.mxu0 0.0
    %748 = vmatprep.subr.mxu0 0.0
    %749 = vmatpush1.msra.mxu0 0.0
    %750 = vmatprep.subr.mxu0 0.0
    %751 = vmatpush1.msra.mxu0 0.0
    %752 = vmatprep.subr.mxu0 0.0
    %753 = vmatpush1.msra.mxu0 0.0
    %754 = vmatprep.subr.mxu0 0.0
    %755 = vmatpush1.msra.mxu0 0.0
    %756 = vmatprep.subr.mxu0 0.0
    %757 = vmatpush1.msra.mxu0 0.0
    %758 = vmatprep.subr.mxu0 0.0
    %759 = vmatpush1.msra.mxu0 0.0
    %760 = vmatprep.subr.mxu0 0.0
    %761 = vmatpush1.msra.mxu0 0.0
    %762 = vmatprep.subr.mxu0 0.0
    %763 = vmatpush1.msra.mxu0 0.0
    %764 = vmatprep.mubr.f32.mxu0 0.0
    %765 = vmatmul.mubr.f32.gmra.mrb[0].mxu0 %v621
    %v766 = vpop.f32.mrb[0].mxu0
    %v767 = vadd.f32 0.0, %v766
    %v768 = vpop.f32.mrb[0].mxu0
    %v769 = vadd.f32 0.0, %v768
    %770 = vdwg.mxu0
    %v771 = vadd.f32 %v625, %v696
    %v772 = vadd.f32 %v626, %v698
    %v773 = vadd.f32 %v627, %v767
    %v774 = vadd.f32 %v628, %v769
    %v775 = vxor.u32 %v771, 2147483648
    %v776 = vmul.f32 %v775, 1.442695
    %v777 = vpow.pop %v776
    %v778 = vadd.f32 %v777, 1.0
    %v779 = vrcp.pop %v778
    %v780 = vmul.f32 1.0, %v779
    %v781 = vxor.u32 %v772, 2147483648
    %v782 = vmul.f32 %v781, 1.442695
    %v783 = vpow.pop %v782
    %v784 = vadd.f32 %v783, 1.0
    %v785 = vrcp.pop %v784
    %v786 = vmul.f32 1.0, %v785
    %v787 = vtanh.pop %v773
    %v788 = vxor.u32 %v774, 2147483648
    %v789 = vmul.f32 %v788, 1.442695
    %v790 = vpow.pop %v789
    %v791 = vadd.f32 %v790, 1.0
    %v792 = vrcp.pop %v791
    %v793 = vmul.f32 1.0, %v792
    %v794 = vmul.f32 %v786, %v619
    %v795 = vmul.f32 %v780, %v787
    %v796 = vadd.f32 %v794, %v795
    %v797 = vtanh.pop %v796
    %v798 = vmul.f32 %v793, %v797
    %s799 = smul.u32 2, 4
    %s800 = smul.addr %s799, 8
    %s801 = scalar_lea.vmem [#allocation2], %s800
    %v802 = vld [vmem:[%s801] sm:$0xff]
    %v803 = vld [vmem:[%s801 + $0x8] sm:$0xff]
    %v804 = vld [vmem:[%s801 + $0x10] sm:$0xff]
    %v805 = vld [vmem:[%s801 + $0x18] sm:$0xff]
    %806 = vmatprep.subr.mxu0 %v389
    %807 = vmatpush1.msra.mxu0 %v388
    %808 = vmatprep.subr.mxu0 %v393
    %809 = vmatpush1.msra.mxu0 %v392
    %810 = vmatprep.subr.mxu0 %v397
    %811 = vmatpush1.msra.mxu0 %v396
    %812 = vmatprep.subr.mxu0 %v401
    %813 = vmatpush1.msra.mxu0 %v400
    %814 = vmatprep.subr.mxu0 %v405
    %815 = vmatpush1.msra.mxu0 %v404
    %816 = vmatprep.subr.mxu0 %v409
    %817 = vmatpush1.msra.mxu0 %v408
    %818 = vmatprep.subr.mxu0 %v413
    %819 = vmatpush1.msra.mxu0 %v412
    %820 = vmatprep.subr.mxu0 %v417
    %821 = vmatpush1.msra.mxu0 %v416
    %822 = vmatprep.subr.mxu0 %v421
    %823 = vmatpush1.msra.mxu0 %v420
    %824 = vmatprep.subr.mxu0 %v425
    %825 = vmatpush1.msra.mxu0 %v424
    %826 = vmatprep.subr.mxu0 %v429
    %827 = vmatpush1.msra.mxu0 %v428
    %828 = vmatprep.subr.mxu0 %v433
    %829 = vmatpush1.msra.mxu0 %v432
    %830 = vmatprep.subr.mxu0 %v437
    %831 = vmatpush1.msra.mxu0 %v436
    %832 = vmatprep.subr.mxu0 %v441
    %833 = vmatpush1.msra.mxu0 %v440
    %834 = vmatprep.subr.mxu0 %v445
    %835 = vmatpush1.msra.mxu0 %v444
    %836 = vmatprep.subr.mxu0 %v449
    %837 = vmatpush1.msra.mxu0 %v448
    %838 = vmatprep.subr.mxu0 0.0
    %839 = vmatpush1.msra.mxu0 0.0
    %840 = vmatprep.subr.mxu0 0.0
    %841 = vmatpush1.msra.mxu0 0.0
    %842 = vmatprep.subr.mxu0 0.0
    %843 = vmatpush1.msra.mxu0 0.0
    %844 = vmatprep.subr.mxu0 0.0
    %845 = vmatpush1.msra.mxu0 0.0
    %846 = vmatprep.subr.mxu0 0.0
    %847 = vmatpush1.msra.mxu0 0.0
    %848 = vmatprep.subr.mxu0 0.0
    %849 = vmatpush1.msra.mxu0 0.0
    %850 = vmatprep.subr.mxu0 0.0
    %851 = vmatpush1.msra.mxu0 0.0
    %852 = vmatprep.subr.mxu0 0.0
    %853 = vmatpush1.msra.mxu0 0.0
    %854 = vmatprep.subr.mxu0 0.0
    %855 = vmatpush1.msra.mxu0 0.0
    %856 = vmatprep.subr.mxu0 0.0
    %857 = vmatpush1.msra.mxu0 0.0
    %858 = vmatprep.subr.mxu0 0.0
    %859 = vmatpush1.msra.mxu0 0.0
    %860 = vmatprep.subr.mxu0 0.0
    %861 = vmatpush1.msra.mxu0 0.0
    %862 = vmatprep.subr.mxu0 0.0
    %863 = vmatpush1.msra.mxu0 0.0
    %864 = vmatprep.subr.mxu0 0.0
    %865 = vmatpush1.msra.mxu0 0.0
    %866 = vmatprep.subr.mxu0 0.0
    %867 = vmatpush1.msra.mxu0 0.0
    %868 = vmatprep.subr.mxu0 0.0
    %869 = vmatpush1.msra.mxu0 0.0
    %870 = vmatprep.mubr.f32.mxu0 0.0
    %871 = vmatmul.mubr.f32.gmra.mrb[0].mxu0 %v798
    %v872 = vpop.f32.mrb[0].mxu0
    %v873 = vadd.f32 0.0, %v872
    %v874 = vpop.f32.mrb[0].mxu0
    %v875 = vadd.f32 0.0, %v874
    %876 = vdwg.mxu0
    %877 = vmatprep.subr.mxu0 %v391
    %878 = vmatpush1.msra.mxu0 %v390
    %879 = vmatprep.subr.mxu0 %v395
    %880 = vmatpush1.msra.mxu0 %v394
    %881 = vmatprep.subr.mxu0 %v399
    %882 = vmatpush1.msra.mxu0 %v398
    %883 = vmatprep.subr.mxu0 %v403
    %884 = vmatpush1.msra.mxu0 %v402
    %885 = vmatprep.subr.mxu0 %v407
    %886 = vmatpush1.msra.mxu0 %v406
    %887 = vmatprep.subr.mxu0 %v411
    %888 = vmatpush1.msra.mxu0 %v410
    %889 = vmatprep.subr.mxu0 %v415
    %890 = vmatpush1.msra.mxu0 %v414
    %891 = vmatprep.subr.mxu0 %v419
    %892 = vmatpush1.msra.mxu0 %v418
    %893 = vmatprep.subr.mxu0 %v423
    %894 = vmatpush1.msra.mxu0 %v422
    %895 = vmatprep.subr.mxu0 %v427
    %896 = vmatpush1.msra.mxu0 %v426
    %897 = vmatprep.subr.mxu0 %v431
    %898 = vmatpush1.msra.mxu0 %v430
    %899 = vmatprep.subr.mxu0 %v435
    %900 = vmatpush1.msra.mxu0 %v434
    %901 = vmatprep.subr.mxu0 %v439
    %902 = vmatpush1.msra.mxu0 %v438
    %903 = vmatprep.subr.mxu0 %v443
    %904 = vmatpush1.msra.mxu0 %v442
    %905 = vmatprep.subr.mxu0 %v447
    %906 = vmatpush1.msra.mxu0 %v446
    %907 = vmatprep.subr.mxu0 %v451
    %908 = vmatpush1.msra.mxu0 %v450
    %909 = vmatprep.subr.mxu0 0.0
    %910 = vmatpush1.msra.mxu0 0.0
    %911 = vmatprep.subr.mxu0 0.0
    %912 = vmatpush1.msra.mxu0 0.0
    %913 = vmatprep.subr.mxu0 0.0
    %914 = vmatpush1.msra.mxu0 0.0
    %915 = vmatprep.subr.mxu0 0.0
    %916 = vmatpush1.msra.mxu0 0.0
    %917 = vmatprep.subr.mxu0 0.0
    %918 = vmatpush1.msra.mxu0 0.0
    %919 = vmatprep.subr.mxu0 0.0
    %920 = vmatpush1.msra.mxu0 0.0
    %921 = vmatprep.subr.mxu0 0.0
    %922 = vmatpush1.msra.mxu0 0.0
    %923 = vmatprep.subr.mxu0 0.0
    %924 = vmatpush1.msra.mxu0 0.0
    %925 = vmatprep.subr.mxu0 0.0
    %926 = vmatpush1.msra.mxu0 0.0
    %927 = vmatprep.subr.mxu0 0.0
    %928 = vmatpush1.msra.mxu0 0.0
    %929 = vmatprep.subr.mxu0 0.0
    %930 = vmatpush1.msra.mxu0 0.0
    %931 = vmatprep.subr.mxu0 0.0
    %932 = vmatpush1.msra.mxu0 0.0
    %933 = vmatprep.subr.mxu0 0.0
    %934 = vmatpush1.msra.mxu0 0.0
    %935 = vmatprep.subr.mxu0 0.0
    %936 = vmatpush1.msra.mxu0 0.0
    %937 = vmatprep.subr.mxu0 0.0
    %938 = vmatpush1.msra.mxu0 0.0
    %939 = vmatprep.subr.mxu0 0.0
    %940 = vmatpush1.msra.mxu0 0.0
    %941 = vmatprep.mubr.f32.mxu0 0.0
    %942 = vmatmul.mubr.f32.gmra.mrb[0].mxu0 %v798
    %v943 = vpop.f32.mrb[0].mxu0
    %v944 = vadd.f32 0.0, %v943
    %v945 = vpop.f32.mrb[0].mxu0
    %v946 = vadd.f32 0.0, %v945
    %947 = vdwg.mxu0
    %v948 = vadd.f32 %v802, %v873
    %v949 = vadd.f32 %v803, %v875
    %v950 = vadd.f32 %v804, %v944
    %v951 = vadd.f32 %v805, %v946
    %v952 = vxor.u32 %v948, 2147483648
    %v953 = vmul.f32 %v952, 1.442695
    %v954 = vpow.pop %v953
    %v955 = vadd.f32 %v954, 1.0
    %v956 = vrcp.pop %v955
    %v957 = vmul.f32 1.0, %v956
    %v958 = vxor.u32 %v949, 2147483648
    %v959 = vmul.f32 %v958, 1.442695
    %v960 = vpow.pop %v959
    %v961 = vadd.f32 %v960, 1.0
    %v962 = vrcp.pop %v961
    %v963 = vmul.f32 1.0, %v962
    %v964 = vtanh.pop %v950
    %v965 = vxor.u32 %v951, 2147483648
    %v966 = vmul.f32 %v965, 1.442695
    %v967 = vpow.pop %v966
    %v968 = vadd.f32 %v967, 1.0
    %v969 = vrcp.pop %v968
    %v970 = vmul.f32 1.0, %v969
    %v971 = vmul.f32 %v963, %v796
    %v972 = vmul.f32 %v957, %v964
    %v973 = vadd.f32 %v971, %v972
    %v974 = vtanh.pop %v973
    %v975 = vmul.f32 %v970, %v974
    %s976 = smul.u32 3, 4
    %s977 = smul.addr %s976, 8
    %s978 = scalar_lea.vmem [#allocation2], %s977
    %v979 = vld [vmem:[%s978] sm:$0xff]
    %v980 = vld [vmem:[%s978 + $0x8] sm:$0xff]
    %v981 = vld [vmem:[%s978 + $0x10] sm:$0xff]
    %v982 = vld [vmem:[%s978 + $0x18] sm:$0xff]
    %983 = vmatprep.subr.mxu0 %v389
    %984 = vmatpush1.msra.mxu0 %v388
    %985 = vmatprep.subr.mxu0 %v393
    %986 = vmatpush1.msra.mxu0 %v392
    %987 = vmatprep.subr.mxu0 %v397
    %988 = vmatpush1.msra.mxu0 %v396
    %989 = vmatprep.subr.mxu0 %v401
    %990 = vmatpush1.msra.mxu0 %v400
    %991 = vmatprep.subr.mxu0 %v405
    %992 = vmatpush1.msra.mxu0 %v404
    %993 = vmatprep.subr.mxu0 %v409
    %994 = vmatpush1.msra.mxu0 %v408
    %995 = vmatprep.subr.mxu0 %v413
    %996 = vmatpush1.msra.mxu0 %v412
    %997 = vmatprep.subr.mxu0 %v417
    %998 = vmatpush1.msra.mxu0 %v416
    %999 = vmatprep.subr.mxu0 %v421
    %1000 = vmatpush1.msra.mxu0 %v420
    %1001 = vmatprep.subr.mxu0 %v425
    %1002 = vmatpush1.msra.mxu0 %v424
    %1003 = vmatprep.subr.mxu0 %v429
    %1004 = vmatpush1.msra.mxu0 %v428
    %1005 = vmatprep.subr.mxu0 %v433
    %1006 = vmatpush1.msra.mxu0 %v432
    %1007 = vmatprep.subr.mxu0 %v437
    %1008 = vmatpush1.msra.mxu0 %v436
    %1009 = vmatprep.subr.mxu0 %v441
    %1010 = vmatpush1.msra.mxu0 %v440
    %1011 = vmatprep.subr.mxu0 %v445
    %1012 = vmatpush1.msra.mxu0 %v444
    %1013 = vmatprep.subr.mxu0 %v449
    %1014 = vmatpush1.msra.mxu0 %v448
    %1015 = vmatprep.subr.mxu0 0.0
    %1016 = vmatpush1.msra.mxu0 0.0
    %1017 = vmatprep.subr.mxu0 0.0
    %1018 = vmatpush1.msra.mxu0 0.0
    %1019 = vmatprep.subr.mxu0 0.0
    %1020 = vmatpush1.msra.mxu0 0.0
    %1021 = vmatprep.subr.mxu0 0.0
    %1022 = vmatpush1.msra.mxu0 0.0
    %1023 = vmatprep.subr.mxu0 0.0
    %1024 = vmatpush1.msra.mxu0 0.0
    %1025 = vmatprep.subr.mxu0 0.0
    %1026 = vmatpush1.msra.mxu0 0.0
    %1027 = vmatprep.subr.mxu0 0.0
    %1028 = vmatpush1.msra.mxu0 0.0
    %1029 = vmatprep.subr.mxu0 0.0
    %1030 = vmatpush1.msra.mxu0 0.0
    %1031 = vmatprep.subr.mxu0 0.0
    %1032 = vmatpush1.msra.mxu0 0.0
    %1033 = vmatprep.subr.mxu0 0.0
    %1034 = vmatpush1.msra.mxu0 0.0
    %1035 = vmatprep.subr.mxu0 0.0
    %1036 = vmatpush1.msra.mxu0 0.0
    %1037 = vmatprep.subr.mxu0 0.0
    %1038 = vmatpush1.msra.mxu0 0.0
    %1039 = vmatprep.subr.mxu0 0.0
    %1040 = vmatpush1.msra.mxu0 0.0
    %1041 = vmatprep.subr.mxu0 0.0
    %1042 = vmatpush1.msra.mxu0 0.0
    %1043 = vmatprep.subr.mxu0 0.0
    %1044 = vmatpush1.msra.mxu0 0.0
    %1045 = vmatprep.subr.mxu0 0.0
    %1046 = vmatpush1.msra.mxu0 0.0
    %1047 = vmatprep.mubr.f32.mxu0 0.0
    %1048 = vmatmul.mubr.f32.gmra.mrb[0].mxu0 %v975
    %v1049 = vpop.f32.mrb[0].mxu0
    %v1050 = vadd.f32 0.0, %v1049
    %v1051 = vpop.f32.mrb[0].mxu0
    %v1052 = vadd.f32 0.0, %v1051
    %1053 = vdwg.mxu0
    %1054 = vmatprep.subr.mxu0 %v391
    %1055 = vmatpush1.msra.mxu0 %v390
    %1056 = vmatprep.subr.mxu0 %v395
    %1057 = vmatpush1.msra.mxu0 %v394
    %1058 = vmatprep.subr.mxu0 %v399
    %1059 = vmatpush1.msra.mxu0 %v398
    %1060 = vmatprep.subr.mxu0 %v403
    %1061 = vmatpush1.msra.mxu0 %v402
    %1062 = vmatprep.subr.mxu0 %v407
    %1063 = vmatpush1.msra.mxu0 %v406
    %1064 = vmatprep.subr.mxu0 %v411
    %1065 = vmatpush1.msra.mxu0 %v410
    %1066 = vmatprep.subr.mxu0 %v415
    %1067 = vmatpush1.msra.mxu0 %v414
    %1068 = vmatprep.subr.mxu0 %v419
    %1069 = vmatpush1.msra.mxu0 %v418
    %1070 = vmatprep.subr.mxu0 %v423
    %1071 = vmatpush1.msra.mxu0 %v422
    %1072 = vmatprep.subr.mxu0 %v427
    %1073 = vmatpush1.msra.mxu0 %v426
    %1074 = vmatprep.subr.mxu0 %v431
    %1075 = vmatpush1.msra.mxu0 %v430
    %1076 = vmatprep.subr.mxu0 %v435
    %1077 = vmatpush1.msra.mxu0 %v434
    %1078 = vmatprep.subr.mxu0 %v439
    %1079 = vmatpush1.msra.mxu0 %v438
    %1080 = vmatprep.subr.mxu0 %v443
    %1081 = vmatpush1.msra.mxu0 %v442
    %1082 = vmatprep.subr.mxu0 %v447
    %1083 = vmatpush1.msra.mxu0 %v446
    %1084 = vmatprep.subr.mxu0 %v451
    %1085 = vmatpush1.msra.mxu0 %v450
    %1086 = vmatprep.subr.mxu0 0.0
    %1087 = vmatpush1.msra.mxu0 0.0
    %1088 = vmatprep.subr.mxu0 0.0
    %1089 = vmatpush1.msra.mxu0 0.0
    %1090 = vmatprep.subr.mxu0 0.0
    %1091 = vmatpush1.msra.mxu0 0.0
    %1092 = vmatprep.subr.mxu0 0.0
    %1093 = vmatpush1.msra.mxu0 0.0
    %1094 = vmatprep.subr.mxu0 0.0
    %1095 = vmatpush1.msra.mxu0 0.0
    %1096 = vmatprep.subr.mxu0 0.0
    %1097 = vmatpush1.msra.mxu0 0.0
    %1098 = vmatprep.subr.mxu0 0.0
    %1099 = vmatpush1.msra.mxu0 0.0
    %1100 = vmatprep.subr.mxu0 0.0
    %1101 = vmatpush1.msra.mxu0 0.0
    %1102 = vmatprep.subr.mxu0 0.0
    %1103 = vmatpush1.msra.mxu0 0.0
    %1104 = vmatprep.subr.mxu0 0.0
    %1105 = vmatpush1.msra.mxu0 0.0
    %1106 = vmatprep.subr.mxu0 0.0
    %1107 = vmatpush1.msra.mxu0 0.0
    %1108 = vmatprep.subr.mxu0 0.0
    %1109 = vmatpush1.msra.mxu0 0.0
    %1110 = vmatprep.subr.mxu0 0.0
    %1111 = vmatpush1.msra.mxu0 0.0
    %1112 = vmatprep.subr.mxu0 0.0
    %1113 = vmatpush1.msra.mxu0 0.0
    %1114 = vmatprep.subr.mxu0 0.0
    %1115 = vmatpush1.msra.mxu0 0.0
    %1116 = vmatprep.subr.mxu0 0.0
    %1117 = vmatpush1.msra.mxu0 0.0
    %1118 = vmatprep.mubr.f32.mxu0 0.0
    %1119 = vmatmul.mubr.f32.gmra.mrb[0].mxu0 %v975
    %v1120 = vpop.f32.mrb[0].mxu0
    %v1121 = vadd.f32 0.0, %v1120
    %v1122 = vpop.f32.mrb[0].mxu0
    %v1123 = vadd.f32 0.0, %v1122
    %1124 = vdwg.mxu0
    %v1125 = vadd.f32 %v979, %v1050
    %v1126 = vadd.f32 %v980, %v1052
    %v1127 = vadd.f32 %v981, %v1121
    %v1128 = vadd.f32 %v982, %v1123
    %v1129 = vxor.u32 %v1125, 2147483648
    %v1130 = vmul.f32 %v1129, 1.442695
    %v1131 = vpow.pop %v1130
    %v1132 = vadd.f32 %v1131, 1.0
    %v1133 = vrcp.pop %v1132
    %v1134 = vmul.f32 1.0, %v1133
    %v1135 = vxor.u32 %v1126, 2147483648
    %v1136 = vmul.f32 %v1135, 1.442695
    %v1137 = vpow.pop %v1136
    %v1138 = vadd.f32 %v1137, 1.0
    %v1139 = vrcp.pop %v1138
    %v1140 = vmul.f32 1.0, %v1139
    %v1141 = vtanh.pop %v1127
    %v1142 = vxor.u32 %v1128, 2147483648
    %v1143 = vmul.f32 %v1142, 1.442695
    %v1144 = vpow.pop %v1143
    %v1145 = vadd.f32 %v1144, 1.0
    %v1146 = vrcp.pop %v1145
    %v1147 = vmul.f32 1.0, %v1146
    %v1148 = vmul.f32 %v1140, %v973
    %v1149 = vmul.f32 %v1134, %v1141
    %v1150 = vadd.f32 %v1148, %v1149
    %v1151 = vtanh.pop %v1150
    %v1152 = vmul.f32 %v1147, %v1151
    %s1153 = smul.u32 4, 4
    %s1154 = smul.addr %s1153, 8
    %s1155 = scalar_lea.vmem [#allocation2], %s1154
    %v1156 = vld [vmem:[%s1155] sm:$0xff]
    %v1157 = vld [vmem:[%s1155 + $0x8] sm:$0xff]
    %v1158 = vld [vmem:[%s1155 + $0x10] sm:$0xff]
    %v1159 = vld [vmem:[%s1155 + $0x18] sm:$0xff]
    %1160 = vmatprep.subr.mxu0 %v389
    %1161 = vmatpush1.msra.mxu0 %v388
    %1162 = vmatprep.subr.mxu0 %v393
    %1163 = vmatpush1.msra.mxu0 %v392
    %1164 = vmatprep.subr.mxu0 %v397
    %1165 = vmatpush1.msra.mxu0 %v396
    %1166 = vmatprep.subr.mxu0 %v401
    %1167 = vmatpush1.msra.mxu0 %v400
    %1168 = vmatprep.subr.mxu0 %v405
    %1169 = vmatpush1.msra.mxu0 %v404
    %1170 = vmatprep.subr.mxu0 %v409
    %1171 = vmatpush1.msra.mxu0 %v408
    %1172 = vmatprep.subr.mxu0 %v413
    %1173 = vmatpush1.msra.mxu0 %v412
    %1174 = vmatprep.subr.mxu0 %v417
    %1175 = vmatpush1.msra.mxu0 %v416
    %1176 = vmatprep.subr.mxu0 %v421
    %1177 = vmatpush1.msra.mxu0 %v420
    %1178 = vmatprep.subr.mxu0 %v425
    %1179 = vmatpush1.msra.mxu0 %v424
    %1180 = vmatprep.subr.mxu0 %v429
    %1181 = vmatpush1.msra.mxu0 %v428
    %1182 = vmatprep.subr.mxu0 %v433
    %1183 = vmatpush1.msra.mxu0 %v432
    %1184 = vmatprep.subr.mxu0 %v437
    %1185 = vmatpush1.msra.mxu0 %v436
    %1186 = vmatprep.subr.mxu0 %v441
    %1187 = vmatpush1.msra.mxu0 %v440
    %1188 = vmatprep.subr.mxu0 %v445
    %1189 = vmatpush1.msra.mxu0 %v444
    %1190 = vmatprep.subr.mxu0 %v449
    %1191 = vmatpush1.msra.mxu0 %v448
    %1192 = vmatprep.subr.mxu0 0.0
    %1193 = vmatpush1.msra.mxu0 0.0
    %1194 = vmatprep.subr.mxu0 0.0
    %1195 = vmatpush1.msra.mxu0 0.0
    %1196 = vmatprep.subr.mxu0 0.0
    %1197 = vmatpush1.msra.mxu0 0.0
    %1198 = vmatprep.subr.mxu0 0.0
    %1199 = vmatpush1.msra.mxu0 0.0
    %1200 = vmatprep.subr.mxu0 0.0
    %1201 = vmatpush1.msra.mxu0 0.0
    %1202 = vmatprep.subr.mxu0 0.0
    %1203 = vmatpush1.msra.mxu0 0.0
    %1204 = vmatprep.subr.mxu0 0.0
    %1205 = vmatpush1.msra.mxu0 0.0
    %1206 = vmatprep.subr.mxu0 0.0
    %1207 = vmatpush1.msra.mxu0 0.0
    %1208 = vmatprep.subr.mxu0 0.0
    %1209 = vmatpush1.msra.mxu0 0.0
    %1210 = vmatprep.subr.mxu0 0.0
    %1211 = vmatpush1.msra.mxu0 0.0
    %1212 = vmatprep.subr.mxu0 0.0
    %1213 = vmatpush1.msra.mxu0 0.0
    %1214 = vmatprep.subr.mxu0 0.0
    %1215 = vmatpush1.msra.mxu0 0.0
    %1216 = vmatprep.subr.mxu0 0.0
    %1217 = vmatpush1.msra.mxu0 0.0
    %1218 = vmatprep.subr.mxu0 0.0
    %1219 = vmatpush1.msra.mxu0 0.0
    %1220 = vmatprep.subr.mxu0 0.0
    %1221 = vmatpush1.msra.mxu0 0.0
    %1222 = vmatprep.subr.mxu0 0.0
    %1223 = vmatpush1.msra.mxu0 0.0
    %1224 = vmatprep.mubr.f32.mxu0 0.0
    %1225 = vmatmul.mubr.f32.gmra.mrb[0].mxu0 %v1152
    %v1226 = vpop.f32.mrb[0].mxu0
    %v1227 = vadd.f32 0.0, %v1226
    %v1228 = vpop.f32.mrb[0].mxu0
    %v1229 = vadd.f32 0.0, %v1228
    %1230 = vdwg.mxu0
    %1231 = vmatprep.subr.mxu0 %v391
    %1232 = vmatpush1.msra.mxu0 %v390
    %1233 = vmatprep.subr.mxu0 %v395
    %1234 = vmatpush1.msra.mxu0 %v394
    %1235 = vmatprep.subr.mxu0 %v399
    %1236 = vmatpush1.msra.mxu0 %v398
    %1237 = vmatprep.subr.mxu0 %v403
    %1238 = vmatpush1.msra.mxu0 %v402
    %1239 = vmatprep.subr.mxu0 %v407
    %1240 = vmatpush1.msra.mxu0 %v406
    %1241 = vmatprep.subr.mxu0 %v411
    %1242 = vmatpush1.msra.mxu0 %v410
    %1243 = vmatprep.subr.mxu0 %v415
    %1244 = vmatpush1.msra.mxu0 %v414
    %1245 = vmatprep.subr.mxu0 %v419
    %1246 = vmatpush1.msra.mxu0 %v418
    %1247 = vmatprep.subr.mxu0 %v423
    %1248 = vmatpush1.msra.mxu0 %v422
    %1249 = vmatprep.subr.mxu0 %v427
    %1250 = vmatpush1.msra.mxu0 %v426
    %1251 = vmatprep.subr.mxu0 %v431
    %1252 = vmatpush1.msra.mxu0 %v430
    %1253 = vmatprep.subr.mxu0 %v435
    %1254 = vmatpush1.msra.mxu0 %v434
    %1255 = vmatprep.subr.mxu0 %v439
    %1256 = vmatpush1.msra.mxu0 %v438
    %1257 = vmatprep.subr.mxu0 %v443
    %1258 = vmatpush1.msra.mxu0 %v442
    %1259 = vmatprep.subr.mxu0 %v447
    %1260 = vmatpush1.msra.mxu0 %v446
    %1261 = vmatprep.subr.mxu0 %v451
    %1262 = vmatpush1.msra.mxu0 %v450
    %1263 = vmatprep.subr.mxu0 0.0
    %1264 = vmatpush1.msra.mxu0 0.0
    %1265 = vmatprep.subr.mxu0 0.0
    %1266 = vmatpush1.msra.mxu0 0.0
    %1267 = vmatprep.subr.mxu0 0.0
    %1268 = vmatpush1.msra.mxu0 0.0
    %1269 = vmatprep.subr.mxu0 0.0
    %1270 = vmatpush1.msra.mxu0 0.0
    %1271 = vmatprep.subr.mxu0 0.0
    %1272 = vmatpush1.msra.mxu0 0.0
    %1273 = vmatprep.subr.mxu0 0.0
    %1274 = vmatpush1.msra.mxu0 0.0
    %1275 = vmatprep.subr.mxu0 0.0
    %1276 = vmatpush1.msra.mxu0 0.0
    %1277 = vmatprep.subr.mxu0 0.0
    %1278 = vmatpush1.msra.mxu0 0.0
    %1279 = vmatprep.subr.mxu0 0.0
    %1280 = vmatpush1.msra.mxu0 0.0
    %1281 = vmatprep.subr.mxu0 0.0
    %1282 = vmatpush1.msra.mxu0 0.0
    %1283 = vmatprep.subr.mxu0 0.0
    %1284 = vmatpush1.msra.mxu0 0.0
    %1285 = vmatprep.subr.mxu0 0.0
    %1286 = vmatpush1.msra.mxu0 0.0
    %1287 = vmatprep.subr.mxu0 0.0
    %1288 = vmatpush1.msra.mxu0 0.0
    %1289 = vmatprep.subr.mxu0 0.0
    %1290 = vmatpush1.msra.mxu0 0.0
    %1291 = vmatprep.subr.mxu0 0.0
    %1292 = vmatpush1.msra.mxu0 0.0
    %1293 = vmatprep.subr.mxu0 0.0
    %1294 = vmatpush1.msra.mxu0 0.0
    %1295 = vmatprep.mubr.f32.mxu0 0.0
    %1296 = vmatmul.mubr.f32.gmra.mrb[0].mxu0 %v1152
    %v1297 = vpop.f32.mrb[0].mxu0
    %v1298 = vadd.f32 0.0, %v1297
    %v1299 = vpop.f32.mrb[0].mxu0
    %v1300 = vadd.f32 0.0, %v1299
    %1301 = vdwg.mxu0
    %v1302 = vadd.f32 %v1156, %v1227
    %v1303 = vadd.f32 %v1157, %v1229
    %v1304 = vadd.f32 %v1158, %v1298
    %v1305 = vadd.f32 %v1159, %v1300
    %v1306 = vxor.u32 %v1302, 2147483648
    %v1307 = vmul.f32 %v1306, 1.442695
    %v1308 = vpow.pop %v1307
    %v1309 = vadd.f32 %v1308, 1.0
    %v1310 = vrcp.pop %v1309
    %v1311 = vmul.f32 1.0, %v1310
    %v1312 = vxor.u32 %v1303, 2147483648
    %v1313 = vmul.f32 %v1312, 1.442695
    %v1314 = vpow.pop %v1313
    %v1315 = vadd.f32 %v1314, 1.0
    %v1316 = vrcp.pop %v1315
    %v1317 = vmul.f32 1.0, %v1316
    %v1318 = vtanh.pop %v1304
    %v1319 = vxor.u32 %v1305, 2147483648
    %v1320 = vmul.f32 %v1319, 1.442695
    %v1321 = vpow.pop %v1320
    %v1322 = vadd.f32 %v1321, 1.0
    %v1323 = vrcp.pop %v1322
    %v1324 = vmul.f32 1.0, %v1323
    %v1325 = vmul.f32 %v1317, %v1150
    %v1326 = vmul.f32 %v1311, %v1318
    %v1327 = vadd.f32 %v1325, %v1326
    %v1328 = vtanh.pop %v1327
    %v1329 = vmul.f32 %v1324, %v1328
    %s1330 = smul.u32 5, 4
    %s1331 = smul.addr %s1330, 8
    %s1332 = scalar_lea.vmem [#allocation2], %s1331
    %v1333 = vld [vmem:[%s1332] sm:$0xff]
    %v1334 = vld [vmem:[%s1332 + $0x8] sm:$0xff]
    %v1335 = vld [vmem:[%s1332 + $0x10] sm:$0xff]
    %v1336 = vld [vmem:[%s1332 + $0x18] sm:$0xff]
    %1337 = vmatprep.subr.mxu0 %v389
    %1338 = vmatpush1.msra.mxu0 %v388
    %1339 = vmatprep.subr.mxu0 %v393
    %1340 = vmatpush1.msra.mxu0 %v392
    %1341 = vmatprep.subr.mxu0 %v397
    %1342 = vmatpush1.msra.mxu0 %v396
    %1343 = vmatprep.subr.mxu0 %v401
    %1344 = vmatpush1.msra.mxu0 %v400
    %1345 = vmatprep.subr.mxu0 %v405
    %1346 = vmatpush1.msra.mxu0 %v404
    %1347 = vmatprep.subr.mxu0 %v409
    %1348 = vmatpush1.msra.mxu0 %v408
    %1349 = vmatprep.subr.mxu0 %v413
    %1350 = vmatpush1.msra.mxu0 %v412
    %1351 = vmatprep.subr.mxu0 %v417
    %1352 = vmatpush1.msra.mxu0 %v416
    %1353 = vmatprep.subr.mxu0 %v421
    %1354 = vmatpush1.msra.mxu0 %v420
    %1355 = vmatprep.subr.mxu0 %v425
    %1356 = vmatpush1.msra.mxu0 %v424
    %1357 = vmatprep.subr.mxu0 %v429
    %1358 = vmatpush1.msra.mxu0 %v428
    %1359 = vmatprep.subr.mxu0 %v433
    %1360 = vmatpush1.msra.mxu0 %v432
    %1361 = vmatprep.subr.mxu0 %v437
    %1362 = vmatpush1.msra.mxu0 %v436
    %1363 = vmatprep.subr.mxu0 %v441
    %1364 = vmatpush1.msra.mxu0 %v440
    %1365 = vmatprep.subr.mxu0 %v445
    %1366 = vmatpush1.msra.mxu0 %v444
    %1367 = vmatprep.subr.mxu0 %v449
    %1368 = vmatpush1.msra.mxu0 %v448
    %1369 = vmatprep.subr.mxu0 0.0
    %1370 = vmatpush1.msra.mxu0 0.0
    %1371 = vmatprep.subr.mxu0 0.0
    %1372 = vmatpush1.msra.mxu0 0.0
    %1373 = vmatprep.subr.mxu0 0.0
    %1374 = vmatpush1.msra.mxu0 0.0
    %1375 = vmatprep.subr.mxu0 0.0
    %1376 = vmatpush1.msra.mxu0 0.0
    %1377 = vmatprep.subr.mxu0 0.0
    %1378 = vmatpush1.msra.mxu0 0.0
    %1379 = vmatprep.subr.mxu0 0.0
    %1380 = vmatpush1.msra.mxu0 0.0
    %1381 = vmatprep.subr.mxu0 0.0
    %1382 = vmatpush1.msra.mxu0 0.0
    %1383 = vmatprep.subr.mxu0 0.0
    %1384 = vmatpush1.msra.mxu0 0.0
    %1385 = vmatprep.subr.mxu0 0.0
    %1386 = vmatpush1.msra.mxu0 0.0
    %1387 = vmatprep.subr.mxu0 0.0
    %1388 = vmatpush1.msra.mxu0 0.0
    %1389 = vmatprep.subr.mxu0 0.0
    %1390 = vmatpush1.msra.mxu0 0.0
    %1391 = vmatprep.subr.mxu0 0.0
    %1392 = vmatpush1.msra.mxu0 0.0
    %1393 = vmatprep.subr.mxu0 0.0
    %1394 = vmatpush1.msra.mxu0 0.0
    %1395 = vmatprep.subr.mxu0 0.0
    %1396 = vmatpush1.msra.mxu0 0.0
    %1397 = vmatprep.subr.mxu0 0.0
    %1398 = vmatpush1.msra.mxu0 0.0
    %1399 = vmatprep.subr.mxu0 0.0
    %1400 = vmatpush1.msra.mxu0 0.0
    %1401 = vmatprep.mubr.f32.mxu0 0.0
    %1402 = vmatmul.mubr.f32.gmra.mrb[0].mxu0 %v1329
    %v1403 = vpop.f32.mrb[0].mxu0
    %v1404 = vadd.f32 0.0, %v1403
    %v1405 = vpop.f32.mrb[0].mxu0
    %v1406 = vadd.f32 0.0, %v1405
    %1407 = vdwg.mxu0
    %1408 = vmatprep.subr.mxu0 %v391
    %1409 = vmatpush1.msra.mxu0 %v390
    %1410 = vmatprep.subr.mxu0 %v395
    %1411 = vmatpush1.msra.mxu0 %v394
    %1412 = vmatprep.subr.mxu0 %v399
    %1413 = vmatpush1.msra.mxu0 %v398
    %1414 = vmatprep.subr.mxu0 %v403
    %1415 = vmatpush1.msra.mxu0 %v402
    %1416 = vmatprep.subr.mxu0 %v407
    %1417 = vmatpush1.msra.mxu0 %v406
    %1418 = vmatprep.subr.mxu0 %v411
    %1419 = vmatpush1.msra.mxu0 %v410
    %1420 = vmatprep.subr.mxu0 %v415
    %1421 = vmatpush1.msra.mxu0 %v414
    %1422 = vmatprep.subr.mxu0 %v419
    %1423 = vmatpush1.msra.mxu0 %v418
    %1424 = vmatprep.subr.mxu0 %v423
    %1425 = vmatpush1.msra.mxu0 %v422
    %1426 = vmatprep.subr.mxu0 %v427
    %1427 = vmatpush1.msra.mxu0 %v426
    %1428 = vmatprep.subr.mxu0 %v431
    %1429 = vmatpush1.msra.mxu0 %v430
    %1430 = vmatprep.subr.mxu0 %v435
    %1431 = vmatpush1.msra.mxu0 %v434
    %1432 = vmatprep.subr.mxu0 %v439
    %1433 = vmatpush1.msra.mxu0 %v438
    %1434 = vmatprep.subr.mxu0 %v443
    %1435 = vmatpush1.msra.mxu0 %v442
    %1436 = vmatprep.subr.mxu0 %v447
    %1437 = vmatpush1.msra.mxu0 %v446
    %1438 = vmatprep.subr.mxu0 %v451
    %1439 = vmatpush1.msra.mxu0 %v450
    %1440 = vmatprep.subr.mxu0 0.0
    %1441 = vmatpush1.msra.mxu0 0.0
    %1442 = vmatprep.subr.mxu0 0.0
    %1443 = vmatpush1.msra.mxu0 0.0
    %1444 = vmatprep.subr.mxu0 0.0
    %1445 = vmatpush1.msra.mxu0 0.0
    %1446 = vmatprep.subr.mxu0 0.0
    %1447 = vmatpush1.msra.mxu0 0.0
    %1448 = vmatprep.subr.mxu0 0.0
    %1449 = vmatpush1.msra.mxu0 0.0
    %1450 = vmatprep.subr.mxu0 0.0
    %1451 = vmatpush1.msra.mxu0 0.0
    %1452 = vmatprep.subr.mxu0 0.0
    %1453 = vmatpush1.msra.mxu0 0.0
    %1454 = vmatprep.subr.mxu0 0.0
    %1455 = vmatpush1.msra.mxu0 0.0
    %1456 = vmatprep.subr.mxu0 0.0
    %1457 = vmatpush1.msra.mxu0 0.0
    %1458 = vmatprep.subr.mxu0 0.0
    %1459 = vmatpush1.msra.mxu0 0.0
    %1460 = vmatprep.subr.mxu0 0.0
    %1461 = vmatpush1.msra.mxu0 0.0
    %1462 = vmatprep.subr.mxu0 0.0
    %1463 = vmatpush1.msra.mxu0 0.0
    %1464 = vmatprep.subr.mxu0 0.0
    %1465 = vmatpush1.msra.mxu0 0.0
    %1466 = vmatprep.subr.mxu0 0.0
    %1467 = vmatpush1.msra.mxu0 0.0
    %1468 = vmatprep.subr.mxu0 0.0
    %1469 = vmatpush1.msra.mxu0 0.0
    %1470 = vmatprep.subr.mxu0 0.0
    %1471 = vmatpush1.msra.mxu0 0.0
    %1472 = vmatprep.mubr.f32.mxu0 0.0
    %1473 = vmatmul.mubr.f32.gmra.mrb[0].mxu0 %v1329
    %v1474 = vpop.f32.mrb[0].mxu0
    %v1475 = vadd.f32 0.0, %v1474
    %v1476 = vpop.f32.mrb[0].mxu0
    %v1477 = vadd.f32 0.0, %v1476
    %1478 = vdwg.mxu0
    %v1479 = vadd.f32 %v1333, %v1404
    %v1480 = vadd.f32 %v1334, %v1406
    %v1481 = vadd.f32 %v1335, %v1475
    %v1482 = vadd.f32 %v1336, %v1477
    %v1483 = vxor.u32 %v1479, 2147483648
    %v1484 = vmul.f32 %v1483, 1.442695
    %v1485 = vpow.pop %v1484
    %v1486 = vadd.f32 %v1485, 1.0
    %v1487 = vrcp.pop %v1486
    %v1488 = vmul.f32 1.0, %v1487
    %v1489 = vxor.u32 %v1480, 2147483648
    %v1490 = vmul.f32 %v1489, 1.442695
    %v1491 = vpow.pop %v1490
    %v1492 = vadd.f32 %v1491, 1.0
    %v1493 = vrcp.pop %v1492
    %v1494 = vmul.f32 1.0, %v1493
    %v1495 = vtanh.pop %v1481
    %v1496 = vxor.u32 %v1482, 2147483648
    %v1497 = vmul.f32 %v1496, 1.442695
    %v1498 = vpow.pop %v1497
    %v1499 = vadd.f32 %v1498, 1.0
    %v1500 = vrcp.pop %v1499
    %v1501 = vmul.f32 1.0, %v1500
    %v1502 = vmul.f32 %v1494, %v1327
    %v1503 = vmul.f32 %v1488, %v1495
    %v1504 = vadd.f32 %v1502, %v1503
    %v1505 = vtanh.pop %v1504
    %v1506 = vmul.f32 %v1501, %v1505
    %s1507 = smul.u32 6, 4
    %s1508 = smul.addr %s1507, 8
    %s1509 = scalar_lea.vmem [#allocation2], %s1508
    %v1510 = vld [vmem:[%s1509] sm:$0xff]
    %v1511 = vld [vmem:[%s1509 + $0x8] sm:$0xff]
    %v1512 = vld [vmem:[%s1509 + $0x10] sm:$0xff]
    %v1513 = vld [vmem:[%s1509 + $0x18] sm:$0xff]
    %1514 = vmatprep.subr.mxu0 %v389
    %1515 = vmatpush1.msra.mxu0 %v388
    %1516 = vmatprep.subr.mxu0 %v393
    %1517 = vmatpush1.msra.mxu0 %v392
    %1518 = vmatprep.subr.mxu0 %v397
    %1519 = vmatpush1.msra.mxu0 %v396
    %1520 = vmatprep.subr.mxu0 %v401
    %1521 = vmatpush1.msra.mxu0 %v400
    %1522 = vmatprep.subr.mxu0 %v405
    %1523 = vmatpush1.msra.mxu0 %v404
    %1524 = vmatprep.subr.mxu0 %v409
    %1525 = vmatpush1.msra.mxu0 %v408
    %1526 = vmatprep.subr.mxu0 %v413
    %1527 = vmatpush1.msra.mxu0 %v412
    %1528 = vmatprep.subr.mxu0 %v417
    %1529 = vmatpush1.msra.mxu0 %v416
    %1530 = vmatprep.subr.mxu0 %v421
    %1531 = vmatpush1.msra.mxu0 %v420
    %1532 = vmatprep.subr.mxu0 %v425
    %1533 = vmatpush1.msra.mxu0 %v424
    %1534 = vmatprep.subr.mxu0 %v429
    %1535 = vmatpush1.msra.mxu0 %v428
    %1536 = vmatprep.subr.mxu0 %v433
    %1537 = vmatpush1.msra.mxu0 %v432
    %1538 = vmatprep.subr.mxu0 %v437
    %1539 = vmatpush1.msra.mxu0 %v436
    %1540 = vmatprep.subr.mxu0 %v441
    %1541 = vmatpush1.msra.mxu0 %v440
    %1542 = vmatprep.subr.mxu0 %v445
    %1543 = vmatpush1.msra.mxu0 %v444
    %1544 = vmatprep.subr.mxu0 %v449
    %1545 = vmatpush1.msra.mxu0 %v448
    %1546 = vmatprep.subr.mxu0 0.0
    %1547 = vmatpush1.msra.mxu0 0.0
    %1548 = vmatprep.subr.mxu0 0.0
    %1549 = vmatpush1.msra.mxu0 0.0
    %1550 = vmatprep.subr.mxu0 0.0
    %1551 = vmatpush1.msra.mxu0 0.0
    %1552 = vmatprep.subr.mxu0 0.0
    %1553 = vmatpush1.msra.mxu0 0.0
    %1554 = vmatprep.subr.mxu0 0.0
    %1555 = vmatpush1.msra.mxu0 0.0
    %1556 = vmatprep.subr.mxu0 0.0
    %1557 = vmatpush1.msra.mxu0 0.0
    %1558 = vmatprep.subr.mxu0 0.0
    %1559 = vmatpush1.msra.mxu0 0.0
    %1560 = vmatprep.subr.mxu0 0.0
    %1561 = vmatpush1.msra.mxu0 0.0
    %1562 = vmatprep.subr.mxu0 0.0
    %1563 = vmatpush1.msra.mxu0 0.0
    %1564 = vmatprep.subr.mxu0 0.0
    %1565 = vmatpush1.msra.mxu0 0.0
    %1566 = vmatprep.subr.mxu0 0.0
    %1567 = vmatpush1.msra.mxu0 0.0
    %1568 = vmatprep.subr.mxu0 0.0
    %1569 = vmatpush1.msra.mxu0 0.0
    %1570 = vmatprep.subr.mxu0 0.0
    %1571 = vmatpush1.msra.mxu0 0.0
    %1572 = vmatprep.subr.mxu0 0.0
    %1573 = vmatpush1.msra.mxu0 0.0
    %1574 = vmatprep.subr.mxu0 0.0
    %1575 = vmatpush1.msra.mxu0 0.0
    %1576 = vmatprep.subr.mxu0 0.0
    %1577 = vmatpush1.msra.mxu0 0.0
    %1578 = vmatprep.mubr.f32.mxu0 0.0
    %1579 = vmatmul.mubr.f32.gmra.mrb[0].mxu0 %v1506
    %v1580 = vpop.f32.mrb[0].mxu0
    %v1581 = vadd.f32 0.0, %v1580
    %v1582 = vpop.f32.mrb[0].mxu0
    %v1583 = vadd.f32 0.0, %v1582
    %1584 = vdwg.mxu0
    %1585 = vmatprep.subr.mxu0 %v391
    %1586 = vmatpush1.msra.mxu0 %v390
    %1587 = vmatprep.subr.mxu0 %v395
    %1588 = vmatpush1.msra.mxu0 %v394
    %1589 = vmatprep.subr.mxu0 %v399
    %1590 = vmatpush1.msra.mxu0 %v398
    %1591 = vmatprep.subr.mxu0 %v403
    %1592 = vmatpush1.msra.mxu0 %v402
    %1593 = vmatprep.subr.mxu0 %v407
    %1594 = vmatpush1.msra.mxu0 %v406
    %1595 = vmatprep.subr.mxu0 %v411
    %1596 = vmatpush1.msra.mxu0 %v410
    %1597 = vmatprep.subr.mxu0 %v415
    %1598 = vmatpush1.msra.mxu0 %v414
    %1599 = vmatprep.subr.mxu0 %v419
    %1600 = vmatpush1.msra.mxu0 %v418
    %1601 = vmatprep.subr.mxu0 %v423
    %1602 = vmatpush1.msra.mxu0 %v422
    %1603 = vmatprep.subr.mxu0 %v427
    %1604 = vmatpush1.msra.mxu0 %v426
    %1605 = vmatprep.subr.mxu0 %v431
    %1606 = vmatpush1.msra.mxu0 %v430
    %1607 = vmatprep.subr.mxu0 %v435
    %1608 = vmatpush1.msra.mxu0 %v434
    %1609 = vmatprep.subr.mxu0 %v439
    %1610 = vmatpush1.msra.mxu0 %v438
    %1611 = vmatprep.subr.mxu0 %v443
    %1612 = vmatpush1.msra.mxu0 %v442
    %1613 = vmatprep.subr.mxu0 %v447
    %1614 = vmatpush1.msra.mxu0 %v446
    %1615 = vmatprep.subr.mxu0 %v451
    %1616 = vmatpush1.msra.mxu0 %v450
    %1617 = vmatprep.subr.mxu0 0.0
    %1618 = vmatpush1.msra.mxu0 0.0
    %1619 = vmatprep.subr.mxu0 0.0
    %1620 = vmatpush1.msra.mxu0 0.0
    %1621 = vmatprep.subr.mxu0 0.0
    %1622 = vmatpush1.msra.mxu0 0.0
    %1623 = vmatprep.subr.mxu0 0.0
    %1624 = vmatpush1.msra.mxu0 0.0
    %1625 = vmatprep.subr.mxu0 0.0
    %1626 = vmatpush1.msra.mxu0 0.0
    %1627 = vmatprep.subr.mxu0 0.0
    %1628 = vmatpush1.msra.mxu0 0.0
    %1629 = vmatprep.subr.mxu0 0.0
    %1630 = vmatpush1.msra.mxu0 0.0
    %1631 = vmatprep.subr.mxu0 0.0
    %1632 = vmatpush1.msra.mxu0 0.0
    %1633 = vmatprep.subr.mxu0 0.0
    %1634 = vmatpush1.msra.mxu0 0.0
    %1635 = vmatprep.subr.mxu0 0.0
    %1636 = vmatpush1.msra.mxu0 0.0
    %1637 = vmatprep.subr.mxu0 0.0
    %1638 = vmatpush1.msra.mxu0 0.0
    %1639 = vmatprep.subr.mxu0 0.0
    %1640 = vmatpush1.msra.mxu0 0.0
    %1641 = vmatprep.subr.mxu0 0.0
    %1642 = vmatpush1.msra.mxu0 0.0
    %1643 = vmatprep.subr.mxu0 0.0
    %1644 = vmatpush1.msra.mxu0 0.0
    %1645 = vmatprep.subr.mxu0 0.0
    %1646 = vmatpush1.msra.mxu0 0.0
    %1647 = vmatprep.subr.mxu0 0.0
    %1648 = vmatpush1.msra.mxu0 0.0
    %1649 = vmatprep.mubr.f32.mxu0 0.0
    %1650 = vmatmul.mubr.f32.gmra.mrb[0].mxu0 %v1506
    %v1651 = vpop.f32.mrb[0].mxu0
    %v1652 = vadd.f32 0.0, %v1651
    %v1653 = vpop.f32.mrb[0].mxu0
    %v1654 = vadd.f32 0.0, %v1653
    %1655 = vdwg.mxu0
    %v1656 = vadd.f32 %v1510, %v1581
    %v1657 = vadd.f32 %v1511, %v1583
    %v1658 = vadd.f32 %v1512, %v1652
    %v1659 = vadd.f32 %v1513, %v1654
    %v1660 = vxor.u32 %v1656, 2147483648
    %v1661 = vmul.f32 %v1660, 1.442695
    %v1662 = vpow.pop %v1661
    %v1663 = vadd.f32 %v1662, 1.0
    %v1664 = vrcp.pop %v1663
    %v1665 = vmul.f32 1.0, %v1664
    %v1666 = vxor.u32 %v1657, 2147483648
    %v1667 = vmul.f32 %v1666, 1.442695
    %v1668 = vpow.pop %v1667
    %v1669 = vadd.f32 %v1668, 1.0
    %v1670 = vrcp.pop %v1669
    %v1671 = vmul.f32 1.0, %v1670
    %v1672 = vtanh.pop %v1658
    %v1673 = vxor.u32 %v1659, 2147483648
    %v1674 = vmul.f32 %v1673, 1.442695
    %v1675 = vpow.pop %v1674
    %v1676 = vadd.f32 %v1675, 1.0
    %v1677 = vrcp.pop %v1676
    %v1678 = vmul.f32 1.0, %v1677
    %v1679 = vmul.f32 %v1671, %v1504
    %v1680 = vmul.f32 %v1665, %v1672
    %v1681 = vadd.f32 %v1679, %v1680
    %v1682 = vtanh.pop %v1681
    %v1683 = vmul.f32 %v1678, %v1682
    %s1684 = smul.u32 7, 4
    %s1685 = smul.addr %s1684, 8
    %s1686 = scalar_lea.vmem [#allocation2], %s1685
    %v1687 = vld [vmem:[%s1686] sm:$0xff]
    %v1688 = vld [vmem:[%s1686 + $0x8] sm:$0xff]
    %v1689 = vld [vmem:[%s1686 + $0x10] sm:$0xff]
    %v1690 = vld [vmem:[%s1686 + $0x18] sm:$0xff]
    %1691 = vmatprep.subr.mxu0 %v389
    %1692 = vmatpush1.msra.mxu0 %v388
    %1693 = vmatprep.subr.mxu0 %v393
    %1694 = vmatpush1.msra.mxu0 %v392
    %1695 = vmatprep.subr.mxu0 %v397
    %1696 = vmatpush1.msra.mxu0 %v396
    %1697 = vmatprep.subr.mxu0 %v401
    %1698 = vmatpush1.msra.mxu0 %v400
    %1699 = vmatprep.subr.mxu0 %v405
    %1700 = vmatpush1.msra.mxu0 %v404
    %1701 = vmatprep.subr.mxu0 %v409
    %1702 = vmatpush1.msra.mxu0 %v408
    %1703 = vmatprep.subr.mxu0 %v413
    %1704 = vmatpush1.msra.mxu0 %v412
    %1705 = vmatprep.subr.mxu0 %v417
    %1706 = vmatpush1.msra.mxu0 %v416
    %1707 = vmatprep.subr.mxu0 %v421
    %1708 = vmatpush1.msra.mxu0 %v420
    %1709 = vmatprep.subr.mxu0 %v425
    %1710 = vmatpush1.msra.mxu0 %v424
    %1711 = vmatprep.subr.mxu0 %v429
    %1712 = vmatpush1.msra.mxu0 %v428
    %1713 = vmatprep.subr.mxu0 %v433
    %1714 = vmatpush1.msra.mxu0 %v432
    %1715 = vmatprep.subr.mxu0 %v437
    %1716 = vmatpush1.msra.mxu0 %v436
    %1717 = vmatprep.subr.mxu0 %v441
    %1718 = vmatpush1.msra.mxu0 %v440
    %1719 = vmatprep.subr.mxu0 %v445
    %1720 = vmatpush1.msra.mxu0 %v444
    %1721 = vmatprep.subr.mxu0 %v449
    %1722 = vmatpush1.msra.mxu0 %v448
    %1723 = vmatprep.subr.mxu0 0.0
    %1724 = vmatpush1.msra.mxu0 0.0
    %1725 = vmatprep.subr.mxu0 0.0
    %1726 = vmatpush1.msra.mxu0 0.0
    %1727 = vmatprep.subr.mxu0 0.0
    %1728 = vmatpush1.msra.mxu0 0.0
    %1729 = vmatprep.subr.mxu0 0.0
    %1730 = vmatpush1.msra.mxu0 0.0
    %1731 = vmatprep.subr.mxu0 0.0
    %1732 = vmatpush1.msra.mxu0 0.0
    %1733 = vmatprep.subr.mxu0 0.0
    %1734 = vmatpush1.msra.mxu0 0.0
    %1735 = vmatprep.subr.mxu0 0.0
    %1736 = vmatpush1.msra.mxu0 0.0
    %1737 = vmatprep.subr.mxu0 0.0
    %1738 = vmatpush1.msra.mxu0 0.0
    %1739 = vmatprep.subr.mxu0 0.0
    %1740 = vmatpush1.msra.mxu0 0.0
    %1741 = vmatprep.subr.mxu0 0.0
    %1742 = vmatpush1.msra.mxu0 0.0
    %1743 = vmatprep.subr.mxu0 0.0
    %1744 = vmatpush1.msra.mxu0 0.0
    %1745 = vmatprep.subr.mxu0 0.0
    %1746 = vmatpush1.msra.mxu0 0.0
    %1747 = vmatprep.subr.mxu0 0.0
    %1748 = vmatpush1.msra.mxu0 0.0
    %1749 = vmatprep.subr.mxu0 0.0
    %1750 = vmatpush1.msra.mxu0 0.0
    %1751 = vmatprep.subr.mxu0 0.0
    %1752 = vmatpush1.msra.mxu0 0.0
    %1753 = vmatprep.subr.mxu0 0.0
    %1754 = vmatpush1.msra.mxu0 0.0
    %1755 = vmatprep.mubr.f32.mxu0 0.0
    %1756 = vmatmul.mubr.f32.gmra.mrb[0].mxu0 %v1683
    %v1757 = vpop.f32.mrb[0].mxu0
    %v1758 = vadd.f32 0.0, %v1757
    %v1759 = vpop.f32.mrb[0].mxu0
    %v1760 = vadd.f32 0.0, %v1759
    %1761 = vdwg.mxu0
    %1762 = vmatprep.subr.mxu0 %v391
    %1763 = vmatpush1.msra.mxu0 %v390
    %1764 = vmatprep.subr.mxu0 %v395
    %1765 = vmatpush1.msra.mxu0 %v394
    %1766 = vmatprep.subr.mxu0 %v399
    %1767 = vmatpush1.msra.mxu0 %v398
    %1768 = vmatprep.subr.mxu0 %v403
    %1769 = vmatpush1.msra.mxu0 %v402
    %1770 = vmatprep.subr.mxu0 %v407
    %1771 = vmatpush1.msra.mxu0 %v406
    %1772 = vmatprep.subr.mxu0 %v411
    %1773 = vmatpush1.msra.mxu0 %v410
    %1774 = vmatprep.subr.mxu0 %v415
    %1775 = vmatpush1.msra.mxu0 %v414
    %1776 = vmatprep.subr.mxu0 %v419
    %1777 = vmatpush1.msra.mxu0 %v418
    %1778 = vmatprep.subr.mxu0 %v423
    %1779 = vmatpush1.msra.mxu0 %v422
    %1780 = vmatprep.subr.mxu0 %v427
    %1781 = vmatpush1.msra.mxu0 %v426
    %1782 = vmatprep.subr.mxu0 %v431
    %1783 = vmatpush1.msra.mxu0 %v430
    %1784 = vmatprep.subr.mxu0 %v435
    %1785 = vmatpush1.msra.mxu0 %v434
    %1786 = vmatprep.subr.mxu0 %v439
    %1787 = vmatpush1.msra.mxu0 %v438
    %1788 = vmatprep.subr.mxu0 %v443
    %1789 = vmatpush1.msra.mxu0 %v442
    %1790 = vmatprep.subr.mxu0 %v447
    %1791 = vmatpush1.msra.mxu0 %v446
    %1792 = vmatprep.subr.mxu0 %v451
    %1793 = vmatpush1.msra.mxu0 %v450
    %1794 = vmatprep.subr.mxu0 0.0
    %1795 = vmatpush1.msra.mxu0 0.0
    %1796 = vmatprep.subr.mxu0 0.0
    %1797 = vmatpush1.msra.mxu0 0.0
    %1798 = vmatprep.subr.mxu0 0.0
    %1799 = vmatpush1.msra.mxu0 0.0
    %1800 = vmatprep.subr.mxu0 0.0
    %1801 = vmatpush1.msra.mxu0 0.0
    %1802 = vmatprep.subr.mxu0 0.0
    %1803 = vmatpush1.msra.mxu0 0.0
    %1804 = vmatprep.subr.mxu0 0.0
    %1805 = vmatpush1.msra.mxu0 0.0
    %1806 = vmatprep.subr.mxu0 0.0
    %1807 = vmatpush1.msra.mxu0 0.0
    %1808 = vmatprep.subr.mxu0 0.0
    %1809 = vmatpush1.msra.mxu0 0.0
    %1810 = vmatprep.subr.mxu0 0.0
    %1811 = vmatpush1.msra.mxu0 0.0
    %1812 = vmatprep.subr.mxu0 0.0
    %1813 = vmatpush1.msra.mxu0 0.0
    %1814 = vmatprep.subr.mxu0 0.0
    %1815 = vmatpush1.msra.mxu0 0.0
    %1816 = vmatprep.subr.mxu0 0.0
    %1817 = vmatpush1.msra.mxu0 0.0
    %1818 = vmatprep.subr.mxu0 0.0
    %1819 = vmatpush1.msra.mxu0 0.0
    %1820 = vmatprep.subr.mxu0 0.0
    %1821 = vmatpush1.msra.mxu0 0.0
    %1822 = vmatprep.subr.mxu0 0.0
    %1823 = vmatpush1.msra.mxu0 0.0
    %1824 = vmatprep.subr.mxu0 0.0
    %1825 = vmatpush1.msra.mxu0 0.0
    %1826 = vmatprep.mubr.f32.mxu0 0.0
    %1827 = vmatmul.mubr.f32.gmra.mrb[0].mxu0 %v1683
    %v1828 = vpop.f32.mrb[0].mxu0
    %v1829 = vadd.f32 0.0, %v1828
    %v1830 = vpop.f32.mrb[0].mxu0
    %v1831 = vadd.f32 0.0, %v1830
    %1832 = vdwg.mxu0
    %v1833 = vadd.f32 %v1687, %v1758
    %v1834 = vadd.f32 %v1688, %v1760
    %v1835 = vadd.f32 %v1689, %v1829
    %v1836 = vadd.f32 %v1690, %v1831
    %v1837 = vxor.u32 %v1833, 2147483648
    %v1838 = vmul.f32 %v1837, 1.442695
    %v1839 = vpow.pop %v1838
    %v1840 = vadd.f32 %v1839, 1.0
    %v1841 = vrcp.pop %v1840
    %v1842 = vmul.f32 1.0, %v1841
    %v1843 = vxor.u32 %v1834, 2147483648
    %v1844 = vmul.f32 %v1843, 1.442695
    %v1845 = vpow.pop %v1844
    %v1846 = vadd.f32 %v1845, 1.0
    %v1847 = vrcp.pop %v1846
    %v1848 = vmul.f32 1.0, %v1847
    %v1849 = vtanh.pop %v1835
    %v1850 = vxor.u32 %v1836, 2147483648
    %v1851 = vmul.f32 %v1850, 1.442695
    %v1852 = vpow.pop %v1851
    %v1853 = vadd.f32 %v1852, 1.0
    %v1854 = vrcp.pop %v1853
    %v1855 = vmul.f32 1.0, %v1854
    %v1856 = vmul.f32 %v1848, %v1681
    %v1857 = vmul.f32 %v1842, %v1849
    %v1858 = vadd.f32 %v1856, %v1857
    %v1859 = vtanh.pop %v1858
    %v1860 = vmul.f32 %v1855, %v1859
    %v1861 = vld [vmem:[#allocation6] sm:$0xff]
    %v1862 = vld [vmem:[#allocation6 + $0x8] sm:$0xff]
    %v1863 = vld [vmem:[#allocation6 + $0x10] sm:$0xff]
    %v1864 = vld [vmem:[#allocation6 + $0x18] sm:$0xff]
    %v1865 = vld [vmem:[#allocation6 + $0x20] sm:$0xff]
    %v1866 = vld [vmem:[#allocation6 + $0x28] sm:$0xff]
    %v1867 = vld [vmem:[#allocation6 + $0x30] sm:$0xff]
    %v1868 = vld [vmem:[#allocation6 + $0x38] sm:$0xff]
    %v1869 = vld [vmem:[#allocation6 + $0x40] sm:$0xff]
    %v1870 = vld [vmem:[#allocation6 + $0x48] sm:$0xff]
    %v1871 = vld [vmem:[#allocation6 + $0x50] sm:$0xff]
    %v1872 = vld [vmem:[#allocation6 + $0x58] sm:$0xff]
    %v1873 = vld [vmem:[#allocation6 + $0x60] sm:$0xff]
    %v1874 = vld [vmem:[#allocation6 + $0x68] sm:$0xff]
    %v1875 = vld [vmem:[#allocation6 + $0x70] sm:$0xff]
    %v1876 = vld [vmem:[#allocation6 + $0x78] sm:$0xff]
    %v1877 = vld [vmem:[%s5] sm:$0x1]
    %v1879 = vlaneseq
    %v1880 = vshrl.u32 %v1879, 7
    %v1881 = vsub.s32 0, %v1880
    %v1882 = vrot.slane %v1877, %v1881
    %1884 = vmatprep.subr.mxu0 0.0
    %1885 = vmatpush1.msra.mxu0 %v1861
    %1886 = vmatprep.subr.mxu0 0.0
    %1887 = vmatpush1.msra.mxu0 %v1862
    %1888 = vmatprep.subr.mxu0 0.0
    %1889 = vmatpush1.msra.mxu0 %v1863
    %1890 = vmatprep.subr.mxu0 0.0
    %1891 = vmatpush1.msra.mxu0 %v1864
    %1892 = vmatprep.subr.mxu0 0.0
    %1893 = vmatpush1.msra.mxu0 %v1865
    %1894 = vmatprep.subr.mxu0 0.0
    %1895 = vmatpush1.msra.mxu0 %v1866
    %1896 = vmatprep.subr.mxu0 0.0
    %1897 = vmatpush1.msra.mxu0 %v1867
    %1898 = vmatprep.subr.mxu0 0.0
    %1899 = vmatpush1.msra.mxu0 %v1868
    %1900 = vmatprep.subr.mxu0 0.0
    %1901 = vmatpush1.msra.mxu0 %v1869
    %1902 = vmatprep.subr.mxu0 0.0
    %1903 = vmatpush1.msra.mxu0 %v1870
    %1904 = vmatprep.subr.mxu0 0.0
    %1905 = vmatpush1.msra.mxu0 %v1871
    %1906 = vmatprep.subr.mxu0 0.0
    %1907 = vmatpush1.msra.mxu0 %v1872
    %1908 = vmatprep.subr.mxu0 0.0
    %1909 = vmatpush1.msra.mxu0 %v1873
    %1910 = vmatprep.subr.mxu0 0.0
    %1911 = vmatpush1.msra.mxu0 %v1874
    %1912 = vmatprep.subr.mxu0 0.0
    %1913 = vmatpush1.msra.mxu0 %v1875
    %1914 = vmatprep.subr.mxu0 0.0
    %1915 = vmatpush1.msra.mxu0 %v1876
    %1916 = vmatprep.subr.mxu0 0.0
    %1917 = vmatpush1.msra.mxu0 0.0
    %1918 = vmatprep.subr.mxu0 0.0
    %1919 = vmatpush1.msra.mxu0 0.0
    %1920 = vmatprep.subr.mxu0 0.0
    %1921 = vmatpush1.msra.mxu0 0.0
    %1922 = vmatprep.subr.mxu0 0.0
    %1923 = vmatpush1.msra.mxu0 0.0
    %1924 = vmatprep.subr.mxu0 0.0
    %1925 = vmatpush1.msra.mxu0 0.0
    %1926 = vmatprep.subr.mxu0 0.0
    %1927 = vmatpush1.msra.mxu0 0.0
    %1928 = vmatprep.subr.mxu0 0.0
    %1929 = vmatpush1.msra.mxu0 0.0
    %1930 = vmatprep.subr.mxu0 0.0
    %1931 = vmatpush1.msra.mxu0 0.0
    %1932 = vmatprep.subr.mxu0 0.0
    %1933 = vmatpush1.msra.mxu0 0.0
    %1934 = vmatprep.subr.mxu0 0.0
    %1935 = vmatpush1.msra.mxu0 0.0
    %1936 = vmatprep.subr.mxu0 0.0
    %1937 = vmatpush1.msra.mxu0 0.0
    %1938 = vmatprep.subr.mxu0 0.0
    %1939 = vmatpush1.msra.mxu0 0.0
    %1940 = vmatprep.subr.mxu0 0.0
    %1941 = vmatpush1.msra.mxu0 0.0
    %1942 = vmatprep.subr.mxu0 0.0
    %1943 = vmatpush1.msra.mxu0 0.0
    %1944 = vmatprep.subr.mxu0 0.0
    %1945 = vmatpush1.msra.mxu0 0.0
    %1946 = vmatprep.subr.mxu0 0.0
    %1947 = vmatpush1.msra.mxu0 0.0
    %1948 = vmatprep.mubr.f32.mxu0 0.0
    %1949 = vmatmul.mubr.f32.gmra.mrb[0].mxu0 %v1860
    %v1950 = vpop.f32.mrb[0].mxu0
    %v1951 = vadd.f32 %v1882, %v1950
    %v1952 = vpop.f32.mrb[0].mxu0
    %1953 = vdwg.mxu0
    %1954 = vst [vmem:[#allocation8] sm:$0xff] %v1951
    // Predicated region
    $region42: #{tpu_custom_call.1} parent=1 // pred_check
      _
    $region43: #{tpu_custom_call.1} parent=1 // pred_check_branch
      %1956 = sbr.rel (0) target = $region45
    $region44: #{tpu_custom_call.1} parent=1 // pred_region
      %s1958 = ssub.s32 128, 128
      %1959 = vsyncadd [#allocation5], %s1958
      %s1961 = sshll.u32 [#allocation8], 4
      %s1962 = int_to_ptr.vmem [resolvable:$true] %s1961
      %1964 = dma.vmem_to_hbm [thread:$0]  %s1962, 128, %s8, [#allocation5]
    $region45: #{tpu_custom_call.1} parent=1 // pred_fallthru
      _
    // Predicated region
    $region46: #{tpu_custom_call.1} parent=1 // pred_check
      _
    $region47: #{tpu_custom_call.1} parent=1 // pred_check_branch
      %1966 = sbr.rel (0) target = $region49
    $region48: #{tpu_custom_call.1} parent=1 // pred_region
      %1967 = dma.done [#allocation5], 128
    $region49: #{tpu_custom_call.1} parent=1 // pred_fallthru
      _
    %1968 = vsyncpa [#allocation4], 1
    %1969 = vsyncpa [#allocation7], 1
    %1970 = vsyncpa [#allocation5], 1

</llo_original>
